<compile_context>
chip_gen: v7x
topology: tpu7x:2x2x1
jax: 0.10.0
libtpu: 0.0.40
codegen_flags: <defaults>
</compile_context>

<pallas_src>
import functools
import math

import jax
import jax.numpy as jnp
from jax.experimental import pallas as pl
from jax.experimental.pallas import tpu as pltpu


COARSE_ROWS = 8  # latent[:8] passes through untouched; latent[8:] is mixed.


def _layernorm(x, w2d, b2d, eps=1e-5):
    mu = jnp.mean(x, axis=-1, keepdims=True)
    var = jnp.mean((x - mu) ** 2, axis=-1, keepdims=True)
    return (x - mu) * jax.lax.rsqrt(var + eps) * w2d + b2d


def _mixing_kernel(nhead, d_model, f_dim,
                   lat_ref, rnd_ref, wa_ref, w2_ref, vec_ref, o_ref):
    E, F = d_model, f_dim
    hd = E // nhead

    lat = lat_ref[...]                     # (N, E) f32
    tgt = lat[COARSE_ROWS:, :]             # (L, E)  == latent[8:]
    mem = rnd_ref[COARSE_ROWS:, :]         # (S, E)  == random[8:]
    L = tgt.shape[0]

    # Packed bias / LayerNorm vectors (one DMA, static slices).
    vec = vec_ref[...]                     # (8, max(3E, F))
    bq = vec[0:1, :E]
    bkv = vec[0:1, E:3 * E]
    bo = vec[1:2, :E]
    b1 = vec[2:3, :F]
    b2 = vec[3:4, :E]
    n2w, n2b = vec[4:5, :E], vec[5:6, :E]
    n3w, n3b = vec[6:7, :E], vec[7:8, :E]

    # Projections. Attention scale is folded into Wq / bq on the host;
    # Wk|Wv are fused into one (E, 2E) matmul (both consume `mem`).
    q = jnp.dot(tgt, wa_ref[:, :E],
                preferred_element_type=jnp.float32) + bq                 # (L, E)
    kv = jnp.dot(mem, wa_ref[:, E:3 * E],
                 preferred_element_type=jnp.float32) + bkv               # (S, 2E)

    wo = wa_ref[:, 3 * E:4 * E]            # (E, E)  == out_proj.weight.T

    # Multi-head attention: statically unrolled over heads on contiguous
    # lane slices; the output projection is accumulated per head so no
    # (L, nhead, hd) intermediate or lane-concat is ever formed.
    attn = jnp.zeros((L, E), jnp.float32)
    for h in range(nhead):
        qh = q[:, h * hd:(h + 1) * hd]                                   # (L, hd)
        kh = kv[:, h * hd:(h + 1) * hd]                                  # (S, hd)
        vh = kv[:, E + h * hd:E + (h + 1) * hd]                          # (S, hd)
        s = jax.lax.dot_general(qh, kh, (((1,), (1,)), ((), ())),
                                preferred_element_type=jnp.float32)      # (L, S)
        s = s - jnp.max(s, axis=-1, keepdims=True)
        p = jnp.exp(s)
        p = p * pl.reciprocal(jnp.sum(p, axis=-1, keepdims=True), approx=True)
        ctx = jnp.dot(p, vh, preferred_element_type=jnp.float32)         # (L, hd)
        attn = attn + jnp.dot(ctx, wo[h * hd:(h + 1) * hd, :],
                              preferred_element_type=jnp.float32)        # (L, E)
    attn = attn + bo

    # residual + norm2
    x = _layernorm(tgt + attn, n2w, n2b)

    # FFN: linear2(relu(linear1(x)))
    h1 = jnp.dot(x, wa_ref[:, 4 * E:4 * E + F],
                 preferred_element_type=jnp.float32) + b1
    h1 = jnp.maximum(h1, 0.0)
    y = jnp.dot(h1, w2_ref[...], preferred_element_type=jnp.float32) + b2

    # residual + norm3
    fine = _layernorm(x + y, n3w, n3b)

    # attn_style = concat([latent[:8], fine]) -- two tile-aligned stores,
    # no concatenated temporary.
    o_ref[:COARSE_ROWS, :] = lat[:COARSE_ROWS, :]
    o_ref[COARSE_ROWS:, :] = fine.astype(o_ref.dtype)


def pack_params(params, nhead):
    """One-time host-side weight packing (hoisted out of the per-call path)."""
    E = params["out_proj_w"].shape[0]
    F = params["linear1_w"].shape[0]
    hd = E // nhead
    scale = 1.0 / math.sqrt(hd)

    w_in = params["in_proj_w"]             # (3E, E)  packed [Wq; Wk; Wv]
    b_in = params["in_proj_b"]             # (3E,)

    # Weight slab: [Wq.T*scale | Wk.T | Wv.T | Wo.T | W1.T]  -> (E, 4E + F)
    w_a = jnp.concatenate(
        [w_in[:E].T * scale, w_in[E:2 * E].T, w_in[2 * E:].T,
         params["out_proj_w"].T, params["linear1_w"].T], axis=1).astype(jnp.float32)
    w2 = params["linear2_w"].T.astype(jnp.float32)       # (F, E)

    # Bias / LayerNorm slab: 8 rows x max(3E, F) lanes.
    W = max(3 * E, F)
    b_qkv = jnp.concatenate([b_in[:E] * scale, b_in[E:2 * E], b_in[2 * E:]])
    vec = jnp.zeros((8, W), jnp.float32)
    vec = vec.at[0, :3 * E].set(b_qkv)
    vec = vec.at[1, :E].set(params["out_proj_b"])
    vec = vec.at[2, :F].set(params["linear1_b"])
    vec = vec.at[3, :E].set(params["linear2_b"])
    vec = vec.at[4, :E].set(params["norm2_w"])
    vec = vec.at[5, :E].set(params["norm2_b"])
    vec = vec.at[6, :E].set(params["norm3_w"])
    vec = vec.at[7, :E].set(params["norm3_b"])

    return {"w_a": w_a, "w2": w2, "vec": vec, "E": int(E), "F": int(F),
            "nhead": int(nhead)}


def mixing_transformer(latent_b, random_b, packed):
    """Batched MixingTransformer.forward over B (latent, random) pairs.

    latent_b, random_b: (B, N, E). Returns (B, N, E) with rows [:8] passed
    through and rows [8:] mixed by the fine transformer layer.
    """
    B, N, E = latent_b.shape
    F, nhead = packed["F"], packed["nhead"]
    L = N - COARSE_ROWS

    flops = B * 2 * (3 * L * E * E        # q + fused kv proj
                     + 2 * L * L * E      # scores + context (all heads)
                     + L * E * E          # out proj
                     + 2 * L * E * F)     # ffn
    transcendentals = B * (nhead * L * L + nhead * L)     # exp + reciprocal
    bytes_accessed = 4 * (3 * B * N * E
                          + packed["w_a"].size + packed["w2"].size
                          + packed["vec"].size)

    kernel = functools.partial(_mixing_kernel, nhead, E, F)
    return pl.pallas_call(
        kernel,
        out_shape=jax.ShapeDtypeStruct((B, N, E), jnp.float32),
        grid=(B,),
        in_specs=[
            pl.BlockSpec((None, N, E), lambda b: (b, 0, 0)),          # latent
            pl.BlockSpec((None, N, E), lambda b: (b, 0, 0)),          # random
            pl.BlockSpec(packed["w_a"].shape, lambda b: (0, 0)),      # resident
            pl.BlockSpec(packed["w2"].shape, lambda b: (0, 0)),       # resident
            pl.BlockSpec(packed["vec"].shape, lambda b: (0, 0)),      # resident
        ],
        out_specs=pl.BlockSpec((None, N, E), lambda b: (b, 0, 0)),
        compiler_params=pltpu.CompilerParams(
            dimension_semantics=("parallel",)),                       # 2 TCs on v7x
        cost_estimate=pl.CostEstimate(flops=int(flops),
                                      transcendentals=int(transcendentals),
                                      bytes_accessed=int(bytes_accessed)),
    )(latent_b, random_b, packed["w_a"], packed["w2"], packed["vec"])


def mixing_transformer_single(latent, random, packed):
    """Convenience wrapper for a single (N, E) pair."""
    return mixing_transformer(latent[None], random[None], packed)[0]


def _reference(latent, random, params, nhead):
    """Pure-JAX reference of MixingTransformer.forward (eval mode)."""
    tgt = latent[COARSE_ROWS:]
    memory = random[COARSE_ROWS:]
    E = tgt.shape[-1]
    hd = E // nhead
    w, b = params["in_proj_w"], params["in_proj_b"]
    q = tgt @ w[:E].T + b[:E]
    k = memory @ w[E:2 * E].T + b[E:2 * E]
    v = memory @ w[2 * E:].T + b[2 * E:]
    outs = []
    for h in range(nhead):
        qh = q[:, h * hd:(h + 1) * hd] / math.sqrt(hd)
        kh = k[:, h * hd:(h + 1) * hd]
        vh = v[:, h * hd:(h + 1) * hd]
        p = jax.nn.softmax(qh @ kh.T, axis=-1)
        outs.append(p @ vh)
    attn = jnp.concatenate(outs, -1) @ params["out_proj_w"].T + params["out_proj_b"]

    def ln(x, w_, b_):
        mu = x.mean(-1, keepdims=True)
        var = ((x - mu) ** 2).mean(-1, keepdims=True)
        return (x - mu) / jnp.sqrt(var + 1e-5) * w_ + b_

    x = ln(tgt + attn, params["norm2_w"], params["norm2_b"])
    y = (jax.nn.relu(x @ params["linear1_w"].T + params["linear1_b"])
         @ params["linear2_w"].T + params["linear2_b"])
    fine = ln(x + y, params["norm3_w"], params["norm3_b"])
    return jnp.concatenate([latent[:COARSE_ROWS], fine], axis=0)


if __name__ == "__main__":
    d_model, nhead, dim_feedforward = 32, 4, 64
    n_latents = 18   # StyleGAN W+ layout: rows 0..7 pass through, rows 8..17 mixed.
    batch = 4        # many (latent, random) pairs in one pallas_call.

    key = jax.random.PRNGKey(0)
    ks = jax.random.split(key, 12)
    params = {
        "in_proj_w":  0.05 * jax.random.normal(ks[0], (3 * d_model, d_model), jnp.float32),
        "in_proj_b":  0.01 * jax.random.normal(ks[1], (3 * d_model,), jnp.float32),
        "out_proj_w": 0.05 * jax.random.normal(ks[2], (d_model, d_model), jnp.float32),
        "out_proj_b": 0.01 * jax.random.normal(ks[3], (d_model,), jnp.float32),
        "linear1_w":  0.05 * jax.random.normal(ks[4], (dim_feedforward, d_model), jnp.float32),
        "linear1_b":  0.01 * jax.random.normal(ks[5], (dim_feedforward,), jnp.float32),
        "linear2_w":  0.05 * jax.random.normal(ks[6], (d_model, dim_feedforward), jnp.float32),
        "linear2_b":  0.01 * jax.random.normal(ks[7], (d_model,), jnp.float32),
        "norm2_w": 1.0 + 0.1 * jax.random.normal(ks[8], (d_model,), jnp.float32),
        "norm2_b": 0.1 * jax.random.normal(ks[9], (d_model,), jnp.float32),
        "norm3_w": 1.0 + 0.1 * jax.random.normal(ks[10], (d_model,), jnp.float32),
        "norm3_b": 0.1 * jax.random.normal(ks[11], (d_model,), jnp.float32),
    }
    # NOTE: self_attn, norm1, dropout1 exist in __init__ but are unused in forward_post.

    packed = pack_params(params, nhead)   # one-time host-side weight prep

    lat_key, rnd_key = jax.random.split(jax.random.PRNGKey(1))
    latent_b = jax.random.normal(lat_key, (batch, n_latents, d_model), jnp.float32)
    random_b = jax.random.normal(rnd_key, (batch, n_latents, d_model), jnp.float32)

    out = mixing_transformer(latent_b, random_b, packed)
    jax.block_until_ready(out)

    ref = jax.vmap(lambda l, r: _reference(l, r, params, nhead))(latent_b, random_b)
    assert out.shape == (batch, n_latents, d_model)
    # approx reciprocal in the in-kernel softmax -> slightly looser tolerance.
    assert jnp.allclose(out, ref, atol=2e-3, rtol=2e-3), float(jnp.max(jnp.abs(out - ref)))
    print("KERNEL_OK")
</pallas_src>

<mosaic_0001>
module attributes {stable_mosaic.version = 11 : i64} {
  func.func @_mixing_kernel(%arg0: i32, %arg1: memref<1x18x32xf32, #tpu.memory_space<vmem>>, %arg2: memref<1x18x32xf32, #tpu.memory_space<vmem>>, %arg3: memref<32x192xf32, #tpu.memory_space<vmem>>, %arg4: memref<64x32xf32, #tpu.memory_space<vmem>>, %arg5: memref<8x96xf32, #tpu.memory_space<vmem>>, %arg6: memref<1x18x32xf32, #tpu.memory_space<vmem>>) attributes {dimension_semantics = [#tpu.dimension_semantics<parallel>], iteration_bounds = array<i64: 4>, scalar_prefetch = 0 : i64, scratch_operands = 0 : i64, tpu.core_type = #tpu.core_type<tc>, window_params = [{transform_indices = @transform_0, window_bounds = array<i64: 1, 18, 32>}, {transform_indices = @transform_1, window_bounds = array<i64: 1, 18, 32>}, {pipeline_mode = #tpu.pipeline_mode<synchronous>, transform_indices = @transform_2, window_bounds = array<i64: 32, 192>}, {pipeline_mode = #tpu.pipeline_mode<synchronous>, transform_indices = @transform_3, window_bounds = array<i64: 64, 32>}, {pipeline_mode = #tpu.pipeline_mode<synchronous>, transform_indices = @transform_4, window_bounds = array<i64: 8, 96>}, {transform_indices = @transform_5, window_bounds = array<i64: 1, 18, 32>}]} {
    %c0 = arith.constant 0 : index
    %c0_0 = arith.constant 0 : index
    %c0_1 = arith.constant 0 : index
    %0 = vector.load %arg1[%c0, %c0_0, %c0_1] : memref<1x18x32xf32, #tpu.memory_space<vmem>>, vector<1x18x32xf32>
    %1 = vector.shape_cast %0 : vector<1x18x32xf32> to vector<18x32xf32>
    %2 = vector.extract_strided_slice %1 {offsets = [8, 0], sizes = [10, 32], strides = [1, 1]} : vector<18x32xf32> to vector<10x32xf32>
    %c0_2 = arith.constant 0 : index
    %c8 = arith.constant 8 : index
    %c0_3 = arith.constant 0 : index
    %3 = vector.load %arg2[%c0_2, %c8, %c0_3] : memref<1x18x32xf32, #tpu.memory_space<vmem>>, vector<1x10x32xf32>
    %4 = vector.shape_cast %3 : vector<1x10x32xf32> to vector<10x32xf32>
    %c0_4 = arith.constant 0 : index
    %c0_5 = arith.constant 0 : index
    %5 = vector.load %arg5[%c0_4, %c0_5] : memref<8x96xf32, #tpu.memory_space<vmem>>, vector<8x96xf32>
    %6 = vector.extract_strided_slice %5 {offsets = [0, 0], sizes = [1, 32], strides = [1, 1]} : vector<8x96xf32> to vector<1x32xf32>
    %7 = vector.extract_strided_slice %5 {offsets = [0, 32], sizes = [1, 64], strides = [1, 1]} : vector<8x96xf32> to vector<1x64xf32>
    %8 = vector.extract_strided_slice %5 {offsets = [1, 0], sizes = [1, 32], strides = [1, 1]} : vector<8x96xf32> to vector<1x32xf32>
    %9 = vector.extract_strided_slice %5 {offsets = [2, 0], sizes = [1, 64], strides = [1, 1]} : vector<8x96xf32> to vector<1x64xf32>
    %10 = vector.extract_strided_slice %5 {offsets = [3, 0], sizes = [1, 32], strides = [1, 1]} : vector<8x96xf32> to vector<1x32xf32>
    %11 = vector.extract_strided_slice %5 {offsets = [4, 0], sizes = [1, 32], strides = [1, 1]} : vector<8x96xf32> to vector<1x32xf32>
    %12 = vector.extract_strided_slice %5 {offsets = [5, 0], sizes = [1, 32], strides = [1, 1]} : vector<8x96xf32> to vector<1x32xf32>
    %13 = vector.extract_strided_slice %5 {offsets = [6, 0], sizes = [1, 32], strides = [1, 1]} : vector<8x96xf32> to vector<1x32xf32>
    %14 = vector.extract_strided_slice %5 {offsets = [7, 0], sizes = [1, 32], strides = [1, 1]} : vector<8x96xf32> to vector<1x32xf32>
    %c0_6 = arith.constant 0 : index
    %c0_7 = arith.constant 0 : index
    %15 = vector.load %arg3[%c0_6, %c0_7] : memref<32x192xf32, #tpu.memory_space<vmem>>, vector<32x32xf32>
    %cst = arith.constant dense<0.000000e+00> : vector<10x32xf32>
    %16 = tpu.matmul %2, %15, %cst {dimension_numbers = #tpu.dot_dimension_numbers<[1], [0], [0], [1], [0, 0, 1, 1], [], []>} : vector<10x32xf32>, vector<32x32xf32>, vector<10x32xf32> -> vector<10x32xf32>
    %17 = vector.broadcast %6 : vector<1x32xf32> to vector<10x32xf32>
    %18 = arith.addf %16, %17 : vector<10x32xf32>
    %c0_8 = arith.constant 0 : index
    %c32 = arith.constant 32 : index
    %19 = vector.load %arg3[%c0_8, %c32] : memref<32x192xf32, #tpu.memory_space<vmem>>, vector<32x64xf32>
    %cst_9 = arith.constant dense<0.000000e+00> : vector<10x64xf32>
    %20 = tpu.matmul %4, %19, %cst_9 {dimension_numbers = #tpu.dot_dimension_numbers<[1], [0], [0], [1], [0, 0, 1, 1], [], []>} : vector<10x32xf32>, vector<32x64xf32>, vector<10x64xf32> -> vector<10x64xf32>
    %21 = vector.broadcast %7 : vector<1x64xf32> to vector<10x64xf32>
    %22 = arith.addf %20, %21 : vector<10x64xf32>
    %c0_10 = arith.constant 0 : index
    %c96 = arith.constant 96 : index
    %23 = vector.load %arg3[%c0_10, %c96] : memref<32x192xf32, #tpu.memory_space<vmem>>, vector<32x32xf32>
    %cst_11 = arith.constant 0.000000e+00 : f32
    %24 = vector.broadcast %cst_11 : f32 to vector<10x32xf32>
    %25 = vector.extract_strided_slice %18 {offsets = [0, 0], sizes = [10, 8], strides = [1, 1]} : vector<10x32xf32> to vector<10x8xf32>
    %26 = vector.extract_strided_slice %22 {offsets = [0, 0], sizes = [10, 8], strides = [1, 1]} : vector<10x64xf32> to vector<10x8xf32>
    %27 = vector.extract_strided_slice %22 {offsets = [0, 32], sizes = [10, 8], strides = [1, 1]} : vector<10x64xf32> to vector<10x8xf32>
    %cst_12 = arith.constant dense<0.000000e+00> : vector<10x10xf32>
    %28 = tpu.matmul %25, %26, %cst_12 {dimension_numbers = #tpu.dot_dimension_numbers<[1], [1], [0], [0], [0, 0, 1, 0], [], []>} : vector<10x8xf32>, vector<10x8xf32>, vector<10x10xf32> -> vector<10x10xf32>
    %cst_13 = arith.constant dense<0xFF800000> : vector<10xf32>
    %29 = vector.multi_reduction <maximumf>, %28, %cst_13 [1] : vector<10x10xf32> to vector<10xf32>
    %30 = vector.shape_cast %29 : vector<10xf32> to vector<10x1xf32>
    %31 = vector.broadcast %30 : vector<10x1xf32> to vector<10x10xf32>
    %32 = arith.subf %28, %31 : vector<10x10xf32>
    %33 = math.exp %32 : vector<10x10xf32>
    %cst_14 = arith.constant dense<0.000000e+00> : vector<10xf32>
    %34 = vector.multi_reduction <add>, %33, %cst_14 [1] : vector<10x10xf32> to vector<10xf32>
    %35 = vector.shape_cast %34 : vector<10xf32> to vector<10x1xf32>
    %36 = tpu.reciprocal %35 {approx = true} : vector<10x1xf32> -> vector<10x1xf32>
    %37 = vector.broadcast %36 : vector<10x1xf32> to vector<10x10xf32>
    %38 = arith.mulf %33, %37 : vector<10x10xf32>
    %cst_15 = arith.constant dense<0.000000e+00> : vector<10x8xf32>
    %39 = tpu.matmul %38, %27, %cst_15 {dimension_numbers = #tpu.dot_dimension_numbers<[1], [0], [0], [1], [0, 0, 1, 1], [], []>} : vector<10x10xf32>, vector<10x8xf32>, vector<10x8xf32> -> vector<10x8xf32>
    %40 = vector.extract_strided_slice %23 {offsets = [0, 0], sizes = [8, 32], strides = [1, 1]} : vector<32x32xf32> to vector<8x32xf32>
    %cst_16 = arith.constant dense<0.000000e+00> : vector<10x32xf32>
    %41 = tpu.matmul %39, %40, %cst_16 {dimension_numbers = #tpu.dot_dimension_numbers<[1], [0], [0], [1], [0, 0, 1, 1], [], []>} : vector<10x8xf32>, vector<8x32xf32>, vector<10x32xf32> -> vector<10x32xf32>
    %42 = arith.addf %24, %41 : vector<10x32xf32>
    %43 = vector.extract_strided_slice %18 {offsets = [0, 8], sizes = [10, 8], strides = [1, 1]} : vector<10x32xf32> to vector<10x8xf32>
    %44 = vector.extract_strided_slice %22 {offsets = [0, 8], sizes = [10, 8], strides = [1, 1]} : vector<10x64xf32> to vector<10x8xf32>
    %45 = vector.extract_strided_slice %22 {offsets = [0, 40], sizes = [10, 8], strides = [1, 1]} : vector<10x64xf32> to vector<10x8xf32>
    %cst_17 = arith.constant dense<0.000000e+00> : vector<10x10xf32>
    %46 = tpu.matmul %43, %44, %cst_17 {dimension_numbers = #tpu.dot_dimension_numbers<[1], [1], [0], [0], [0, 0, 1, 0], [], []>} : vector<10x8xf32>, vector<10x8xf32>, vector<10x10xf32> -> vector<10x10xf32>
    %cst_18 = arith.constant dense<0xFF800000> : vector<10xf32>
    %47 = vector.multi_reduction <maximumf>, %46, %cst_18 [1] : vector<10x10xf32> to vector<10xf32>
    %48 = vector.shape_cast %47 : vector<10xf32> to vector<10x1xf32>
    %49 = vector.broadcast %48 : vector<10x1xf32> to vector<10x10xf32>
    %50 = arith.subf %46, %49 : vector<10x10xf32>
    %51 = math.exp %50 : vector<10x10xf32>
    %cst_19 = arith.constant dense<0.000000e+00> : vector<10xf32>
    %52 = vector.multi_reduction <add>, %51, %cst_19 [1] : vector<10x10xf32> to vector<10xf32>
    %53 = vector.shape_cast %52 : vector<10xf32> to vector<10x1xf32>
    %54 = tpu.reciprocal %53 {approx = true} : vector<10x1xf32> -> vector<10x1xf32>
    %55 = vector.broadcast %54 : vector<10x1xf32> to vector<10x10xf32>
    %56 = arith.mulf %51, %55 : vector<10x10xf32>
    %cst_20 = arith.constant dense<0.000000e+00> : vector<10x8xf32>
    %57 = tpu.matmul %56, %45, %cst_20 {dimension_numbers = #tpu.dot_dimension_numbers<[1], [0], [0], [1], [0, 0, 1, 1], [], []>} : vector<10x10xf32>, vector<10x8xf32>, vector<10x8xf32> -> vector<10x8xf32>
    %58 = vector.extract_strided_slice %23 {offsets = [8, 0], sizes = [8, 32], strides = [1, 1]} : vector<32x32xf32> to vector<8x32xf32>
    %cst_21 = arith.constant dense<0.000000e+00> : vector<10x32xf32>
    %59 = tpu.matmul %57, %58, %cst_21 {dimension_numbers = #tpu.dot_dimension_numbers<[1], [0], [0], [1], [0, 0, 1, 1], [], []>} : vector<10x8xf32>, vector<8x32xf32>, vector<10x32xf32> -> vector<10x32xf32>
    %60 = arith.addf %42, %59 : vector<10x32xf32>
    %61 = vector.extract_strided_slice %18 {offsets = [0, 16], sizes = [10, 8], strides = [1, 1]} : vector<10x32xf32> to vector<10x8xf32>
    %62 = vector.extract_strided_slice %22 {offsets = [0, 16], sizes = [10, 8], strides = [1, 1]} : vector<10x64xf32> to vector<10x8xf32>
    %63 = vector.extract_strided_slice %22 {offsets = [0, 48], sizes = [10, 8], strides = [1, 1]} : vector<10x64xf32> to vector<10x8xf32>
    %cst_22 = arith.constant dense<0.000000e+00> : vector<10x10xf32>
    %64 = tpu.matmul %61, %62, %cst_22 {dimension_numbers = #tpu.dot_dimension_numbers<[1], [1], [0], [0], [0, 0, 1, 0], [], []>} : vector<10x8xf32>, vector<10x8xf32>, vector<10x10xf32> -> vector<10x10xf32>
    %cst_23 = arith.constant dense<0xFF800000> : vector<10xf32>
    %65 = vector.multi_reduction <maximumf>, %64, %cst_23 [1] : vector<10x10xf32> to vector<10xf32>
    %66 = vector.shape_cast %65 : vector<10xf32> to vector<10x1xf32>
    %67 = vector.broadcast %66 : vector<10x1xf32> to vector<10x10xf32>
    %68 = arith.subf %64, %67 : vector<10x10xf32>
    %69 = math.exp %68 : vector<10x10xf32>
    %cst_24 = arith.constant dense<0.000000e+00> : vector<10xf32>
    %70 = vector.multi_reduction <add>, %69, %cst_24 [1] : vector<10x10xf32> to vector<10xf32>
    %71 = vector.shape_cast %70 : vector<10xf32> to vector<10x1xf32>
    %72 = tpu.reciprocal %71 {approx = true} : vector<10x1xf32> -> vector<10x1xf32>
    %73 = vector.broadcast %72 : vector<10x1xf32> to vector<10x10xf32>
    %74 = arith.mulf %69, %73 : vector<10x10xf32>
    %cst_25 = arith.constant dense<0.000000e+00> : vector<10x8xf32>
    %75 = tpu.matmul %74, %63, %cst_25 {dimension_numbers = #tpu.dot_dimension_numbers<[1], [0], [0], [1], [0, 0, 1, 1], [], []>} : vector<10x10xf32>, vector<10x8xf32>, vector<10x8xf32> -> vector<10x8xf32>
    %76 = vector.extract_strided_slice %23 {offsets = [16, 0], sizes = [8, 32], strides = [1, 1]} : vector<32x32xf32> to vector<8x32xf32>
    %cst_26 = arith.constant dense<0.000000e+00> : vector<10x32xf32>
    %77 = tpu.matmul %75, %76, %cst_26 {dimension_numbers = #tpu.dot_dimension_numbers<[1], [0], [0], [1], [0, 0, 1, 1], [], []>} : vector<10x8xf32>, vector<8x32xf32>, vector<10x32xf32> -> vector<10x32xf32>
    %78 = arith.addf %60, %77 : vector<10x32xf32>
    %79 = vector.extract_strided_slice %18 {offsets = [0, 24], sizes = [10, 8], strides = [1, 1]} : vector<10x32xf32> to vector<10x8xf32>
    %80 = vector.extract_strided_slice %22 {offsets = [0, 24], sizes = [10, 8], strides = [1, 1]} : vector<10x64xf32> to vector<10x8xf32>
    %81 = vector.extract_strided_slice %22 {offsets = [0, 56], sizes = [10, 8], strides = [1, 1]} : vector<10x64xf32> to vector<10x8xf32>
    %cst_27 = arith.constant dense<0.000000e+00> : vector<10x10xf32>
    %82 = tpu.matmul %79, %80, %cst_27 {dimension_numbers = #tpu.dot_dimension_numbers<[1], [1], [0], [0], [0, 0, 1, 0], [], []>} : vector<10x8xf32>, vector<10x8xf32>, vector<10x10xf32> -> vector<10x10xf32>
    %cst_28 = arith.constant dense<0xFF800000> : vector<10xf32>
    %83 = vector.multi_reduction <maximumf>, %82, %cst_28 [1] : vector<10x10xf32> to vector<10xf32>
    %84 = vector.shape_cast %83 : vector<10xf32> to vector<10x1xf32>
    %85 = vector.broadcast %84 : vector<10x1xf32> to vector<10x10xf32>
    %86 = arith.subf %82, %85 : vector<10x10xf32>
    %87 = math.exp %86 : vector<10x10xf32>
    %cst_29 = arith.constant dense<0.000000e+00> : vector<10xf32>
    %88 = vector.multi_reduction <add>, %87, %cst_29 [1] : vector<10x10xf32> to vector<10xf32>
    %89 = vector.shape_cast %88 : vector<10xf32> to vector<10x1xf32>
    %90 = tpu.reciprocal %89 {approx = true} : vector<10x1xf32> -> vector<10x1xf32>
    %91 = vector.broadcast %90 : vector<10x1xf32> to vector<10x10xf32>
    %92 = arith.mulf %87, %91 : vector<10x10xf32>
    %cst_30 = arith.constant dense<0.000000e+00> : vector<10x8xf32>
    %93 = tpu.matmul %92, %81, %cst_30 {dimension_numbers = #tpu.dot_dimension_numbers<[1], [0], [0], [1], [0, 0, 1, 1], [], []>} : vector<10x10xf32>, vector<10x8xf32>, vector<10x8xf32> -> vector<10x8xf32>
    %94 = vector.extract_strided_slice %23 {offsets = [24, 0], sizes = [8, 32], strides = [1, 1]} : vector<32x32xf32> to vector<8x32xf32>
    %cst_31 = arith.constant dense<0.000000e+00> : vector<10x32xf32>
    %95 = tpu.matmul %93, %94, %cst_31 {dimension_numbers = #tpu.dot_dimension_numbers<[1], [0], [0], [1], [0, 0, 1, 1], [], []>} : vector<10x8xf32>, vector<8x32xf32>, vector<10x32xf32> -> vector<10x32xf32>
    %96 = arith.addf %78, %95 : vector<10x32xf32>
    %97 = vector.broadcast %8 : vector<1x32xf32> to vector<10x32xf32>
    %98 = arith.addf %96, %97 : vector<10x32xf32>
    %99 = arith.addf %2, %98 : vector<10x32xf32>
    %cst_32 = arith.constant dense<0.000000e+00> : vector<10xf32>
    %100 = vector.multi_reduction <add>, %99, %cst_32 [1] : vector<10x32xf32> to vector<10xf32>
    %101 = vector.shape_cast %100 : vector<10xf32> to vector<10x1xf32>
    %cst_33 = arith.constant 3.200000e+01 : f32
    %102 = vector.broadcast %cst_33 : f32 to vector<10x1xf32>
    %103 = arith.divf %101, %102 : vector<10x1xf32>
    %104 = vector.broadcast %103 : vector<10x1xf32> to vector<10x32xf32>
    %105 = arith.subf %99, %104 : vector<10x32xf32>
    %106 = arith.mulf %105, %105 : vector<10x32xf32>
    %cst_34 = arith.constant dense<0.000000e+00> : vector<10xf32>
    %107 = vector.multi_reduction <add>, %106, %cst_34 [1] : vector<10x32xf32> to vector<10xf32>
    %108 = vector.shape_cast %107 : vector<10xf32> to vector<10x1xf32>
    %cst_35 = arith.constant 3.200000e+01 : f32
    %109 = vector.broadcast %cst_35 : f32 to vector<10x1xf32>
    %110 = arith.divf %108, %109 : vector<10x1xf32>
    %111 = vector.broadcast %103 : vector<10x1xf32> to vector<10x32xf32>
    %112 = arith.subf %99, %111 : vector<10x32xf32>
    %cst_36 = arith.constant 9.99999974E-6 : f32
    %113 = vector.broadcast %cst_36 : f32 to vector<10x1xf32>
    %114 = arith.addf %110, %113 : vector<10x1xf32>
    %115 = math.rsqrt %114 : vector<10x1xf32>
    %116 = vector.broadcast %115 : vector<10x1xf32> to vector<10x32xf32>
    %117 = arith.mulf %112, %116 : vector<10x32xf32>
    %118 = vector.broadcast %11 : vector<1x32xf32> to vector<10x32xf32>
    %119 = arith.mulf %117, %118 : vector<10x32xf32>
    %120 = vector.broadcast %12 : vector<1x32xf32> to vector<10x32xf32>
    %121 = arith.addf %119, %120 : vector<10x32xf32>
    %c0_37 = arith.constant 0 : index
    %c128 = arith.constant 128 : index
    %122 = vector.load %arg3[%c0_37, %c128] : memref<32x192xf32, #tpu.memory_space<vmem>>, vector<32x64xf32>
    %cst_38 = arith.constant dense<0.000000e+00> : vector<10x64xf32>
    %123 = tpu.matmul %121, %122, %cst_38 {dimension_numbers = #tpu.dot_dimension_numbers<[1], [0], [0], [1], [0, 0, 1, 1], [], []>} : vector<10x32xf32>, vector<32x64xf32>, vector<10x64xf32> -> vector<10x64xf32>
    %124 = vector.broadcast %9 : vector<1x64xf32> to vector<10x64xf32>
    %125 = arith.addf %123, %124 : vector<10x64xf32>
    %cst_39 = arith.constant 0.000000e+00 : f32
    %126 = vector.broadcast %cst_39 : f32 to vector<10x64xf32>
    %127 = arith.maximumf %125, %126 : vector<10x64xf32>
    %c0_40 = arith.constant 0 : index
    %c0_41 = arith.constant 0 : index
    %128 = vector.load %arg4[%c0_40, %c0_41] : memref<64x32xf32, #tpu.memory_space<vmem>>, vector<64x32xf32>
    %cst_42 = arith.constant dense<0.000000e+00> : vector<10x32xf32>
    %129 = tpu.matmul %127, %128, %cst_42 {dimension_numbers = #tpu.dot_dimension_numbers<[1], [0], [0], [1], [0, 0, 1, 1], [], []>} : vector<10x64xf32>, vector<64x32xf32>, vector<10x32xf32> -> vector<10x32xf32>
    %130 = vector.broadcast %10 : vector<1x32xf32> to vector<10x32xf32>
    %131 = arith.addf %129, %130 : vector<10x32xf32>
    %132 = arith.addf %121, %131 : vector<10x32xf32>
    %cst_43 = arith.constant dense<0.000000e+00> : vector<10xf32>
    %133 = vector.multi_reduction <add>, %132, %cst_43 [1] : vector<10x32xf32> to vector<10xf32>
    %134 = vector.shape_cast %133 : vector<10xf32> to vector<10x1xf32>
    %cst_44 = arith.constant 3.200000e+01 : f32
    %135 = vector.broadcast %cst_44 : f32 to vector<10x1xf32>
    %136 = arith.divf %134, %135 : vector<10x1xf32>
    %137 = vector.broadcast %136 : vector<10x1xf32> to vector<10x32xf32>
    %138 = arith.subf %132, %137 : vector<10x32xf32>
    %139 = arith.mulf %138, %138 : vector<10x32xf32>
    %cst_45 = arith.constant dense<0.000000e+00> : vector<10xf32>
    %140 = vector.multi_reduction <add>, %139, %cst_45 [1] : vector<10x32xf32> to vector<10xf32>
    %141 = vector.shape_cast %140 : vector<10xf32> to vector<10x1xf32>
    %cst_46 = arith.constant 3.200000e+01 : f32
    %142 = vector.broadcast %cst_46 : f32 to vector<10x1xf32>
    %143 = arith.divf %141, %142 : vector<10x1xf32>
    %144 = vector.broadcast %136 : vector<10x1xf32> to vector<10x32xf32>
    %145 = arith.subf %132, %144 : vector<10x32xf32>
    %cst_47 = arith.constant 9.99999974E-6 : f32
    %146 = vector.broadcast %cst_47 : f32 to vector<10x1xf32>
    %147 = arith.addf %143, %146 : vector<10x1xf32>
    %148 = math.rsqrt %147 : vector<10x1xf32>
    %149 = vector.broadcast %148 : vector<10x1xf32> to vector<10x32xf32>
    %150 = arith.mulf %145, %149 : vector<10x32xf32>
    %151 = vector.broadcast %13 : vector<1x32xf32> to vector<10x32xf32>
    %152 = arith.mulf %150, %151 : vector<10x32xf32>
    %153 = vector.broadcast %14 : vector<1x32xf32> to vector<10x32xf32>
    %154 = arith.addf %152, %153 : vector<10x32xf32>
    %155 = vector.extract_strided_slice %1 {offsets = [0, 0], sizes = [8, 32], strides = [1, 1]} : vector<18x32xf32> to vector<8x32xf32>
    %c0_48 = arith.constant 0 : index
    %c0_49 = arith.constant 0 : index
    %c0_50 = arith.constant 0 : index
    %156 = vector.load %arg6[%c0_48, %c0_49, %c0_50] : memref<1x18x32xf32, #tpu.memory_space<vmem>>, vector<1x8x32xf32>
    %157 = vector.shape_cast %156 : vector<1x8x32xf32> to vector<8x32xf32>
    %158 = vector.shape_cast %155 : vector<8x32xf32> to vector<1x8x32xf32>
    tpu.vector_store %arg6[%c0_48, %c0_49, %c0_50], %158 {strides = array<i32>} : memref<1x18x32xf32, #tpu.memory_space<vmem>>, vector<1x8x32xf32>,
    %c0_51 = arith.constant 0 : index
    %c8_52 = arith.constant 8 : index
    %c0_53 = arith.constant 0 : index
    %159 = vector.load %arg6[%c0_51, %c8_52, %c0_53] : memref<1x18x32xf32, #tpu.memory_space<vmem>>, vector<1x10x32xf32>
    %160 = vector.shape_cast %159 : vector<1x10x32xf32> to vector<10x32xf32>
    %161 = vector.shape_cast %154 : vector<10x32xf32> to vector<1x10x32xf32>
    tpu.vector_store %arg6[%c0_51, %c8_52, %c0_53], %161 {strides = array<i32>} : memref<1x18x32xf32, #tpu.memory_space<vmem>>, vector<1x10x32xf32>,
    return
  }
  func.func @transform_0(%arg0: i32) -> (i32, i32, i32) {
    %c0_i32 = arith.constant 0 : i32
    %c0_i32_0 = arith.constant 0 : i32
    %c0_i32_1 = arith.constant 0 : i32
    return %arg0, %c0_i32, %c0_i32_0 : i32, i32, i32
  }
  func.func @transform_1(%arg0: i32) -> (i32, i32, i32) {
    %c0_i32 = arith.constant 0 : i32
    %c0_i32_0 = arith.constant 0 : i32
    %c0_i32_1 = arith.constant 0 : i32
    return %arg0, %c0_i32, %c0_i32_0 : i32, i32, i32
  }
  func.func @transform_2(%arg0: i32) -> (i32, i32) {
    %c0_i32 = arith.constant 0 : i32
    %c0_i32_0 = arith.constant 0 : i32
    %c0_i32_1 = arith.constant 0 : i32
    return %c0_i32, %c0_i32_0 : i32, i32
  }
  func.func @transform_3(%arg0: i32) -> (i32, i32) {
    %c0_i32 = arith.constant 0 : i32
    %c0_i32_0 = arith.constant 0 : i32
    %c0_i32_1 = arith.constant 0 : i32
    return %c0_i32, %c0_i32_0 : i32, i32
  }
  func.func @transform_4(%arg0: i32) -> (i32, i32) {
    %c0_i32 = arith.constant 0 : i32
    %c0_i32_0 = arith.constant 0 : i32
    %c0_i32_1 = arith.constant 0 : i32
    return %c0_i32, %c0_i32_0 : i32, i32
  }
  func.func @transform_5(%arg0: i32) -> (i32, i32, i32) {
    %c0_i32 = arith.constant 0 : i32
    %c0_i32_0 = arith.constant 0 : i32
    %c0_i32_1 = arith.constant 0 : i32
    return %arg0, %c0_i32, %c0_i32_0 : i32, i32, i32
  }
}

</mosaic_0001>

<llo_original>
// kernel: tpu_custom_call.1
$region0: #{tpu_custom_call.1}
  #allocation0 [shape = 'u32[]', space=smem, size = 0x4, offset = 0x4, fixed_abs, tag = 'smem constant byte address 0x4 - core index']
  #allocation1 [shape = 'u32[144,128]{1,0:T(1,128)}', space=vmem, size = 0x12000, scoped, tag = 'internal scratch']
  %s0 = inlined_call_operand.vmem [shape: f32[4,18,32], index: 0, kind: input, shape index: {}]
  %s1 = inlined_call_operand.vmem [shape: f32[4,18,32], index: 1, kind: input, shape index: {}]
  %s2 = inlined_call_operand.vmem [shape: f32[32,192], index: 2, kind: input, shape index: {}]
  %s3 = inlined_call_operand.vmem [shape: f32[64,32], index: 3, kind: input, shape index: {}]
  %s4 = inlined_call_operand.vmem [shape: f32[8,96], index: 4, kind: input, shape index: {}]
  %s5 = inlined_call_operand.vmem [shape: f32[4,18,32], index: 5, kind: output, shape index: {}]
  %s6 = sld [smem:[#allocation0]]
  $region53: #{tpu_custom_call.1} parent=0
    _
  %s8 = ssub.s32 1, %s6
  %s9 = scalar_select 0, %s8, %s6
  loop: start=0, step=1, limit=6
  $region2: #{tpu_custom_call.1} parent=0 // loop_pre_header
    _
  $region3: #{tpu_custom_call.1} parent=0 // loop_header
    %s11 = sphi 0, %s15
    %p12 = scmp.ge.s32.totalorder %s11, 6
    %s21 = sphi 0, %s23
    %s24 = sphi 0, %s21
    %s25 = sphi 0, %s24
    %s41 = sphi 0, %s25
    %s47 = sphi 0, %s49
    %s50 = sphi 0, %s47
    %s51 = sphi 0, %s50
    %s67 = sphi 0, %s51
    %s71 = sphi 0, %s71
    %s73 = sphi 0, %s71
    %s74 = sphi 0, %s73
    %s88 = sphi 0, %s74
    %s92 = sphi 0, %s92
    %s94 = sphi 0, %s92
    %s95 = sphi 0, %s94
    %s109 = sphi 0, %s95
    %s113 = sphi 0, %s113
    %s115 = sphi 0, %s113
    %s116 = sphi 0, %s115
    %s130 = sphi 0, %s116
    %s136 = sphi 0, %s138
    %s139 = sphi 0, %s136
    %s140 = sphi 0, %s139
    %s156 = sphi 0, %s140
  $region4: #{tpu_custom_call.1} parent=0 // loop_header_branch
    %14 = sbr.rel (%p12) target = $region8
  $region5: #{tpu_custom_call.1} parent=0 // loop_body
    %s16 = ssub.s32 %s11, 1
    %s17 = ssub.s32 %s11, 2
    %s18 = sadd.s32 %s11, 1
    %s19 = ssub.s32 %s11, %s18
    %p20 = scmp.eq.s32.totalorder %s19, 0
    %s22 = sadd.s32 %s21, 1
    %s23 = scalar_select %p20, %s21, %s22
    %p26 = pneg %p20
    %p27 = scmp.eq.s32.totalorder %s11, 3
    %p28 = por %p26, %p27
    %p29 = scmp.ne.s32.totalorder %s21, %s24
    %p30 = scmp.eq.s32.totalorder %s11, 0
    %p31 = por %p29, %p30
    %p32 = scmp.ne.s32.totalorder %s21, %s24
    %p33 = scmp.eq.s32.totalorder %s16, 3
    %p34 = por %p32, %p33
    %p35 = scmp.ne.s32.totalorder %s24, %s25
    %p36 = scmp.eq.s32.totalorder %s16, 0
    %p37 = por %p35, %p36
    %p38 = scmp.ne.s32.totalorder %s24, %s25
    %p39 = scmp.eq.s32.totalorder %s17, 3
    %p40 = por %p38, %p39
    %p42 = scmp.ne.s32.totalorder %s25, %s41
    %p43 = scmp.eq.s32.totalorder %s17, 0
    %p44 = por %p42, %p43
    %s45 = ssub.s32 %s11, %s18
    %p46 = scmp.eq.s32.totalorder %s45, 0
    %s48 = sadd.s32 %s47, 1
    %s49 = scalar_select %p46, %s47, %s48
    %p52 = pneg %p46
    %p53 = scmp.eq.s32.totalorder %s11, 3
    %p54 = por %p52, %p53
    %p55 = scmp.ne.s32.totalorder %s47, %s50
    %p56 = scmp.eq.s32.totalorder %s11, 0
    %p57 = por %p55, %p56
    %p58 = scmp.ne.s32.totalorder %s47, %s50
    %p59 = scmp.eq.s32.totalorder %s16, 3
    %p60 = por %p58, %p59
    %p61 = scmp.ne.s32.totalorder %s50, %s51
    %p62 = scmp.eq.s32.totalorder %s16, 0
    %p63 = por %p61, %p62
    %p64 = scmp.ne.s32.totalorder %s50, %s51
    %p65 = scmp.eq.s32.totalorder %s17, 3
    %p66 = por %p64, %p65
    %p68 = scmp.ne.s32.totalorder %s51, %s67
    %p69 = scmp.eq.s32.totalorder %s17, 0
    %p70 = por %p68, %p69
    %s72 = sadd.s32 %s71, 1
    %p75 = scmp.eq.s32.totalorder %s11, 3
    %p76 = scmp.ne.s32.totalorder %s71, %s73
    %p77 = scmp.eq.s32.totalorder %s11, 0
    %p78 = por %p76, %p77
    %p79 = scmp.ne.s32.totalorder %s71, %s73
    %p80 = scmp.eq.s32.totalorder %s16, 3
    %p81 = por %p79, %p80
    %p82 = scmp.ne.s32.totalorder %s73, %s74
    %p83 = scmp.eq.s32.totalorder %s16, 0
    %p84 = por %p82, %p83
    %p85 = scmp.ne.s32.totalorder %s73, %s74
    %p86 = scmp.eq.s32.totalorder %s17, 3
    %p87 = por %p85, %p86
    %p89 = scmp.ne.s32.totalorder %s74, %s88
    %p90 = scmp.eq.s32.totalorder %s17, 0
    %p91 = por %p89, %p90
    %s93 = sadd.s32 %s92, 1
    %p96 = scmp.eq.s32.totalorder %s11, 3
    %p97 = scmp.ne.s32.totalorder %s92, %s94
    %p98 = scmp.eq.s32.totalorder %s11, 0
    %p99 = por %p97, %p98
    %p100 = scmp.ne.s32.totalorder %s92, %s94
    %p101 = scmp.eq.s32.totalorder %s16, 3
    %p102 = por %p100, %p101
    %p103 = scmp.ne.s32.totalorder %s94, %s95
    %p104 = scmp.eq.s32.totalorder %s16, 0
    %p105 = por %p103, %p104
    %p106 = scmp.ne.s32.totalorder %s94, %s95
    %p107 = scmp.eq.s32.totalorder %s17, 3
    %p108 = por %p106, %p107
    %p110 = scmp.ne.s32.totalorder %s95, %s109
    %p111 = scmp.eq.s32.totalorder %s17, 0
    %p112 = por %p110, %p111
    %s114 = sadd.s32 %s113, 1
    %p117 = scmp.eq.s32.totalorder %s11, 3
    %p118 = scmp.ne.s32.totalorder %s113, %s115
    %p119 = scmp.eq.s32.totalorder %s11, 0
    %p120 = por %p118, %p119
    %p121 = scmp.ne.s32.totalorder %s113, %s115
    %p122 = scmp.eq.s32.totalorder %s16, 3
    %p123 = por %p121, %p122
    %p124 = scmp.ne.s32.totalorder %s115, %s116
    %p125 = scmp.eq.s32.totalorder %s16, 0
    %p126 = por %p124, %p125
    %p127 = scmp.ne.s32.totalorder %s115, %s116
    %p128 = scmp.eq.s32.totalorder %s17, 3
    %p129 = por %p127, %p128
    %p131 = scmp.ne.s32.totalorder %s116, %s130
    %p132 = scmp.eq.s32.totalorder %s17, 0
    %p133 = por %p131, %p132
    %s134 = ssub.s32 %s11, %s18
    %p135 = scmp.eq.s32.totalorder %s134, 0
    %s137 = sadd.s32 %s136, 1
    %s138 = scalar_select %p135, %s136, %s137
    %p141 = pneg %p135
    %p142 = scmp.eq.s32.totalorder %s11, 3
    %p143 = por %p141, %p142
    %p144 = scmp.ne.s32.totalorder %s136, %s139
    %p145 = scmp.eq.s32.totalorder %s11, 0
    %p146 = por %p144, %p145
    %p147 = scmp.ne.s32.totalorder %s136, %s139
    %p148 = scmp.eq.s32.totalorder %s16, 3
    %p149 = por %p147, %p148
    %p150 = scmp.ne.s32.totalorder %s139, %s140
    %p151 = scmp.eq.s32.totalorder %s16, 0
    %p152 = por %p150, %p151
    %p153 = scmp.ne.s32.totalorder %s139, %s140
    %p154 = scmp.eq.s32.totalorder %s17, 3
    %p155 = por %p153, %p154
    %p157 = scmp.ne.s32.totalorder %s140, %s156
    %p158 = scmp.eq.s32.totalorder %s17, 0
    %p159 = por %p157, %p158
    %p160 = scmp.le.s32.totalorder 1, %s11
    %p161 = scmp.lt.s32.totalorder %s11, 5
    %p162 = pnand %p160, %p161
    %p163 = pneg %p162
    // Predicated region
    $region9: #{tpu_custom_call.1} parent=5 // pred_check
      _
    $region10: #{tpu_custom_call.1} parent=5 // pred_check_branch
      %165 = sbr.rel (%p162) target = $region12
    $region11: #{tpu_custom_call.1} parent=5 // pred_region
      %s166 = ssub.s32 %s11, 1
      // Predicated region
      $region13: #{tpu_custom_call.1} parent=11 // pred_check
        %p167 = pneg %p84
      $region14: #{tpu_custom_call.1} parent=11 // pred_check_branch
        %169 = sbr.rel (%p167) target = $region16
      $region15: #{tpu_custom_call.1} parent=11 // pred_region
        _
      $region16: #{tpu_custom_call.1} parent=11 // pred_fallthru
        _
      // Predicated region
      $region17: #{tpu_custom_call.1} parent=11 // pred_check
        %p170 = pneg %p105
      $region18: #{tpu_custom_call.1} parent=11 // pred_check_branch
        %172 = sbr.rel (%p170) target = $region20
      $region19: #{tpu_custom_call.1} parent=11 // pred_region
        _
      $region20: #{tpu_custom_call.1} parent=11 // pred_fallthru
        _
      // Predicated region
      $region21: #{tpu_custom_call.1} parent=11 // pred_check
        %p173 = pneg %p126
      $region22: #{tpu_custom_call.1} parent=11 // pred_check_branch
        %175 = sbr.rel (%p173) target = $region24
      $region23: #{tpu_custom_call.1} parent=11 // pred_region
        _
      $region24: #{tpu_custom_call.1} parent=11 // pred_fallthru
        _
    $region12: #{tpu_custom_call.1} parent=5 // pred_fallthru
      _
    %p176 = scmp.lt.s32.totalorder %s11, 4
    // Predicated region
    $region25: #{tpu_custom_call.1} parent=5 // pred_check
      %p177 = pneg %p176
    $region26: #{tpu_custom_call.1} parent=5 // pred_check_branch
      %179 = sbr.rel (%p177) target = $region28
    $region27: #{tpu_custom_call.1} parent=5 // pred_region
      // Predicated region
      $region29: #{tpu_custom_call.1} parent=27 // pred_check
        %p180 = pneg %p31
      $region30: #{tpu_custom_call.1} parent=27 // pred_check_branch
        %182 = sbr.rel (%p180) target = $region32
      $region31: #{tpu_custom_call.1} parent=27 // pred_region
        %p183 = scmp.lt.s32.totalorder %s11, 3
        %s184 = scalar_select %p183, %s11, 3
        %s185 = smul.addr %s184, 3
        %s186 = smul.addr %s185, 8
        %s187 = scalar_lea.vmem %s0, %s186
      $region32: #{tpu_custom_call.1} parent=27 // pred_fallthru
        _
      // Predicated region
      $region33: #{tpu_custom_call.1} parent=27 // pred_check
        %p188 = pneg %p57
      $region34: #{tpu_custom_call.1} parent=27 // pred_check_branch
        %190 = sbr.rel (%p188) target = $region36
      $region35: #{tpu_custom_call.1} parent=27 // pred_region
        %p191 = scmp.lt.s32.totalorder %s11, 3
        %s192 = scalar_select %p191, %s11, 3
        %s193 = smul.addr %s192, 3
        %s194 = smul.addr %s193, 8
        %s195 = scalar_lea.vmem %s1, %s194
      $region36: #{tpu_custom_call.1} parent=27 // pred_fallthru
        _
    $region28: #{tpu_custom_call.1} parent=5 // pred_fallthru
      _
    %p196 = scmp.le.s32.totalorder 1, %s11
    %p197 = scmp.lt.s32.totalorder %s11, 5
    %p198 = pnand %p196, %p197
    %p199 = pneg %p198
    // Predicated region
    $region37: #{tpu_custom_call.1} parent=5 // pred_check
      _
    $region38: #{tpu_custom_call.1} parent=5 // pred_check_branch
      %201 = sbr.rel (%p198) target = $region40
    $region39: #{tpu_custom_call.1} parent=5 // pred_region
      %s202 = ssub.s32 %s11, 1
      %p203 = scmp.lt.s32.totalorder %s16, 3
      %s204 = scalar_select %p203, %s16, 3
      %s205 = smul.addr %s204, 3
      %s206 = smul.addr %s205, 8
      %s207 = scalar_lea.vmem %s0, %s206
      %p208 = pneg %p37
      %p209 = pneg %p34
      %p210 = scmp.lt.s32.totalorder %s16, 3
      %s211 = scalar_select %p210, %s16, 3
      %s212 = smul.addr %s211, 3
      %s213 = smul.addr %s212, 8
      %s214 = scalar_lea.vmem %s1, %s213
      %p215 = pneg %p63
      %p216 = pneg %p60
      %p217 = pneg %p84
      %p218 = pneg %p81
      %p219 = pneg %p105
      %p220 = pneg %p102
      %p221 = pneg %p126
      %p222 = pneg %p123
      %p223 = pneg %p152
      %p224 = pneg %p149
      %p225 = scmp.lt.s32.totalorder %s16, 3
      %s226 = scalar_select %p225, %s16, 3
      %s227 = smul.addr %s226, 3
      %s228 = smul.addr %s227, 8
      %s229 = scalar_lea.vmem %s5, %s228
      %p230 = scmp.lt.s32.totalorder %s16, 3
      %s231 = scalar_select %p230, %s16, 3
      %s232 = smul.addr %s231, 3
      %s233 = smul.addr %s232, 8
      %s234 = scalar_lea.vmem %s0, %s233
      %p235 = scmp.lt.s32.totalorder %s16, 3
      %s236 = scalar_select %p235, %s16, 3
      %s237 = smul.addr %s236, 3
      %s238 = smul.addr %s237, 8
      %s239 = scalar_lea.vmem %s1, %s238
      %p240 = scmp.lt.s32.totalorder %s16, 3
      %s241 = scalar_select %p240, %s16, 3
      %s242 = smul.addr %s241, 3
      %s243 = smul.addr %s242, 8
      %s244 = scalar_lea.vmem %s5, %s243
      %v245 = vld [vmem:[%s234] sm:$0xff]
      %v246 = vld [vmem:[%s234 + $0x8] sm:$0xff]
      %v247 = vld [vmem:[%s234 + $0x10] sm:$0x3]
      %v248 = vld [vmem:[%s239 + $0x8] sm:$0xff]
      %v249 = vld [vmem:[%s239 + $0x10] sm:$0x3]
      %v250 = vld [vmem:[%s4] sm:$0xff]
      %v251 = vld [vmem:[%s2] sm:$0xff]
      %v252 = vld [vmem:[%s2 + $0x10] sm:$0xff]
      %v253 = vld [vmem:[%s2 + $0x20] sm:$0xff]
      %v254 = vld [vmem:[%s2 + $0x30] sm:$0xff]
      %v255 = vlaneseq
      %v256 = vshrl.u32 %v255, 7
      %v257 = vsub.s32 0, %v256
      %v258 = vrot.slane %v250, %v257
      %vm259 = vcmask 261120
      %v261 = vsel %vm259, %v246, 0
      %v264 = vsel %vm259, %v247, 0
      %266 = vmatprep.subr.mxu0 0.0
      %267 = vmatpush1.msra.mxu0 %v251
      %268 = vmatprep.subr.mxu0 0.0
      %269 = vmatpush1.msra.mxu0 %v252
      %270 = vmatprep.subr.mxu0 0.0
      %271 = vmatpush1.msra.mxu0 %v253
      %272 = vmatprep.subr.mxu0 0.0
      %273 = vmatpush1.msra.mxu0 %v254
      %274 = vmatprep.subr.mxu0 0.0
      %275 = vmatpush1.msra.mxu0 0.0
      %276 = vmatprep.subr.mxu0 0.0
      %277 = vmatpush1.msra.mxu0 0.0
      %278 = vmatprep.subr.mxu0 0.0
      %279 = vmatpush1.msra.mxu0 0.0
      %280 = vmatprep.subr.mxu0 0.0
      %281 = vmatpush1.msra.mxu0 0.0
      %282 = vmatprep.subr.mxu0 0.0
      %283 = vmatpush1.msra.mxu0 0.0
      %284 = vmatprep.subr.mxu0 0.0
      %285 = vmatpush1.msra.mxu0 0.0
      %286 = vmatprep.subr.mxu0 0.0
      %287 = vmatpush1.msra.mxu0 0.0
      %288 = vmatprep.subr.mxu0 0.0
      %289 = vmatpush1.msra.mxu0 0.0
      %290 = vmatprep.subr.mxu0 0.0
      %291 = vmatpush1.msra.mxu0 0.0
      %292 = vmatprep.subr.mxu0 0.0
      %293 = vmatpush1.msra.mxu0 0.0
      %294 = vmatprep.subr.mxu0 0.0
      %295 = vmatpush1.msra.mxu0 0.0
      %296 = vmatprep.subr.mxu0 0.0
      %297 = vmatpush1.msra.mxu0 0.0
      %298 = vmatprep.subr.mxu0 0.0
      %299 = vmatpush1.msra.mxu0 0.0
      %300 = vmatprep.subr.mxu0 0.0
      %301 = vmatpush1.msra.mxu0 0.0
      %302 = vmatprep.subr.mxu0 0.0
      %303 = vmatpush1.msra.mxu0 0.0
      %304 = vmatprep.subr.mxu0 0.0
      %305 = vmatpush1.msra.mxu0 0.0
      %306 = vmatprep.subr.mxu0 0.0
      %307 = vmatpush1.msra.mxu0 0.0
      %308 = vmatprep.subr.mxu0 0.0
      %309 = vmatpush1.msra.mxu0 0.0
      %310 = vmatprep.subr.mxu0 0.0
      %311 = vmatpush1.msra.mxu0 0.0
      %312 = vmatprep.subr.mxu0 0.0
      %313 = vmatpush1.msra.mxu0 0.0
      %314 = vmatprep.subr.mxu0 0.0
      %315 = vmatpush1.msra.mxu0 0.0
      %316 = vmatprep.subr.mxu0 0.0
      %317 = vmatpush1.msra.mxu0 0.0
      %318 = vmatprep.subr.mxu0 0.0
      %319 = vmatpush1.msra.mxu0 0.0
      %320 = vmatprep.subr.mxu0 0.0
      %321 = vmatpush1.msra.mxu0 0.0
      %322 = vmatprep.subr.mxu0 0.0
      %323 = vmatpush1.msra.mxu0 0.0
      %324 = vmatprep.subr.mxu0 0.0
      %325 = vmatpush1.msra.mxu0 0.0
      %326 = vmatprep.subr.mxu0 0.0
      %327 = vmatpush1.msra.mxu0 0.0
      %328 = vmatprep.subr.mxu0 0.0
      %329 = vmatpush1.msra.mxu0 0.0
      %330 = vmatprep.mubr.f32.mxu0 0.0
      %331 = vmatmul.mubr.f32.gmra.mrb[0].mxu0 %v261
      %v332 = vpop.f32.mrb[0].mxu0
      %v333 = vadd.f32 %v258, %v332
      %v334 = vpop.f32.mrb[0].mxu0
      %335 = vmatprep.mubr.f32.mxu0 0.0
      %336 = vmatmul.mubr.f32.gmra.mrb[0].mxu0 %v264
      %v337 = vpop.f32.mrb[0].mxu0
      %v338 = vadd.f32 %v258, %v337
      %v339 = vpop.f32.mrb[0].mxu0
      %340 = vdwg.mxu0
      %345 = vrot.lane.b32.xlu0 %v251, 96
      %v346 = vpop.permute.xlu0 %345
      %347 = vrot.lane.b32.xlu0 %v252, 96
      %v348 = vpop.permute.xlu0 %347
      %349 = vrot.lane.b32.xlu0 %v253, 96
      %v350 = vpop.permute.xlu0 %349
      %351 = vrot.lane.b32.xlu0 %v254, 96
      %v352 = vpop.permute.xlu0 %351
      %358 = vrot.lane.b32.xlu0 %v258, 96
      %v359 = vpop.permute.xlu0 %358
      %v362 = vsel %vm259, %v248, 0
      %v365 = vsel %vm259, %v249, 0
      %367 = vmatprep.subr.mxu0 0.0
      %368 = vmatpush1.msra.mxu0 %v346
      %369 = vmatprep.subr.mxu0 0.0
      %370 = vmatpush1.msra.mxu0 %v348
      %371 = vmatprep.subr.mxu0 0.0
      %372 = vmatpush1.msra.mxu0 %v350
      %373 = vmatprep.subr.mxu0 0.0
      %374 = vmatpush1.msra.mxu0 %v352
      %375 = vmatprep.subr.mxu0 0.0
      %376 = vmatpush1.msra.mxu0 0.0
      %377 = vmatprep.subr.mxu0 0.0
      %378 = vmatpush1.msra.mxu0 0.0
      %379 = vmatprep.subr.mxu0 0.0
      %380 = vmatpush1.msra.mxu0 0.0
      %381 = vmatprep.subr.mxu0 0.0
      %382 = vmatpush1.msra.mxu0 0.0
      %383 = vmatprep.subr.mxu0 0.0
      %384 = vmatpush1.msra.mxu0 0.0
      %385 = vmatprep.subr.mxu0 0.0
      %386 = vmatpush1.msra.mxu0 0.0
      %387 = vmatprep.subr.mxu0 0.0
      %388 = vmatpush1.msra.mxu0 0.0
      %389 = vmatprep.subr.mxu0 0.0
      %390 = vmatpush1.msra.mxu0 0.0
      %391 = vmatprep.subr.mxu0 0.0
      %392 = vmatpush1.msra.mxu0 0.0
      %393 = vmatprep.subr.mxu0 0.0
      %394 = vmatpush1.msra.mxu0 0.0
      %395 = vmatprep.subr.mxu0 0.0
      %396 = vmatpush1.msra.mxu0 0.0
      %397 = vmatprep.subr.mxu0 0.0
      %398 = vmatpush1.msra.mxu0 0.0
      %399 = vmatprep.subr.mxu0 0.0
      %400 = vmatpush1.msra.mxu0 0.0
      %401 = vmatprep.subr.mxu0 0.0
      %402 = vmatpush1.msra.mxu0 0.0
      %403 = vmatprep.subr.mxu0 0.0
      %404 = vmatpush1.msra.mxu0 0.0
      %405 = vmatprep.subr.mxu0 0.0
      %406 = vmatpush1.msra.mxu0 0.0
      %407 = vmatprep.subr.mxu0 0.0
      %408 = vmatpush1.msra.mxu0 0.0
      %409 = vmatprep.subr.mxu0 0.0
      %410 = vmatpush1.msra.mxu0 0.0
      %411 = vmatprep.subr.mxu0 0.0
      %412 = vmatpush1.msra.mxu0 0.0
      %413 = vmatprep.subr.mxu0 0.0
      %414 = vmatpush1.msra.mxu0 0.0
      %415 = vmatprep.subr.mxu0 0.0
      %416 = vmatpush1.msra.mxu0 0.0
      %417 = vmatprep.subr.mxu0 0.0
      %418 = vmatpush1.msra.mxu0 0.0
      %419 = vmatprep.subr.mxu0 0.0
      %420 = vmatpush1.msra.mxu0 0.0
      %421 = vmatprep.subr.mxu0 0.0
      %422 = vmatpush1.msra.mxu0 0.0
      %423 = vmatprep.subr.mxu0 0.0
      %424 = vmatpush1.msra.mxu0 0.0
      %425 = vmatprep.subr.mxu0 0.0
      %426 = vmatpush1.msra.mxu0 0.0
      %427 = vmatprep.subr.mxu0 0.0
      %428 = vmatpush1.msra.mxu0 0.0
      %429 = vmatprep.subr.mxu0 0.0
      %430 = vmatpush1.msra.mxu0 0.0
      %431 = vmatprep.mubr.f32.mxu0 0.0
      %432 = vmatmul.mubr.f32.gmra.mrb[0].mxu0 %v362
      %v433 = vpop.f32.mrb[0].mxu0
      %v434 = vadd.f32 %v359, %v433
      %v435 = vpop.f32.mrb[0].mxu0
      %436 = vmatprep.mubr.f32.mxu0 0.0
      %437 = vmatmul.mubr.f32.gmra.mrb[0].mxu0 %v365
      %v438 = vpop.f32.mrb[0].mxu0
      %v439 = vadd.f32 %v359, %v438
      %v440 = vpop.f32.mrb[0].mxu0
      %441 = vdwg.mxu0
      %vm442 = vcmask 64512
      %v444 = vsel %vm442, %v333, 0
      %v447 = vsel %vm442, %v338, 0
      %v450 = vsel %vm442, %v434, 0
      %v453 = vsel %vm442, %v439, 0
      %455 = vmatprep.subr.mxu0 0.0
      %456 = vmatpush1.xpose.msra.mxu0 %v450
      %457 = vmatprep.subr.mxu0 0.0
      %458 = vmatpush1.xpose.msra.mxu0 %v453
      %459 = vmatprep.subr.mxu0 0.0
      %460 = vmatpush1.xpose.msra.mxu0 0.0
      %461 = vmatprep.subr.mxu0 0.0
      %462 = vmatpush1.xpose.msra.mxu0 0.0
      %463 = vmatprep.subr.mxu0 0.0
      %464 = vmatpush1.xpose.msra.mxu0 0.0
      %465 = vmatprep.subr.mxu0 0.0
      %466 = vmatpush1.xpose.msra.mxu0 0.0
      %467 = vmatprep.subr.mxu0 0.0
      %468 = vmatpush1.xpose.msra.mxu0 0.0
      %469 = vmatprep.subr.mxu0 0.0
      %470 = vmatpush1.xpose.msra.mxu0 0.0
      %471 = vmatprep.subr.mxu0 0.0
      %472 = vmatpush1.xpose.msra.mxu0 0.0
      %473 = vmatprep.subr.mxu0 0.0
      %474 = vmatpush1.xpose.msra.mxu0 0.0
      %475 = vmatprep.subr.mxu0 0.0
      %476 = vmatpush1.xpose.msra.mxu0 0.0
      %477 = vmatprep.subr.mxu0 0.0
      %478 = vmatpush1.xpose.msra.mxu0 0.0
      %479 = vmatprep.subr.mxu0 0.0
      %480 = vmatpush1.xpose.msra.mxu0 0.0
      %481 = vmatprep.subr.mxu0 0.0
      %482 = vmatpush1.xpose.msra.mxu0 0.0
      %483 = vmatprep.subr.mxu0 0.0
      %484 = vmatpush1.xpose.msra.mxu0 0.0
      %485 = vmatprep.subr.mxu0 0.0
      %486 = vmatpush1.xpose.msra.mxu0 0.0
      %487 = vmatprep.subr.mxu0 0.0
      %488 = vmatpush1.xpose.msra.mxu0 0.0
      %489 = vmatprep.subr.mxu0 0.0
      %490 = vmatpush1.xpose.msra.mxu0 0.0
      %491 = vmatprep.subr.mxu0 0.0
      %492 = vmatpush1.xpose.msra.mxu0 0.0
      %493 = vmatprep.subr.mxu0 0.0
      %494 = vmatpush1.xpose.msra.mxu0 0.0
      %495 = vmatprep.subr.mxu0 0.0
      %496 = vmatpush1.xpose.msra.mxu0 0.0
      %497 = vmatprep.subr.mxu0 0.0
      %498 = vmatpush1.xpose.msra.mxu0 0.0
      %499 = vmatprep.subr.mxu0 0.0
      %500 = vmatpush1.xpose.msra.mxu0 0.0
      %501 = vmatprep.subr.mxu0 0.0
      %502 = vmatpush1.xpose.msra.mxu0 0.0
      %503 = vmatprep.subr.mxu0 0.0
      %504 = vmatpush1.xpose.msra.mxu0 0.0
      %505 = vmatprep.subr.mxu0 0.0
      %506 = vmatpush1.xpose.msra.mxu0 0.0
      %507 = vmatprep.subr.mxu0 0.0
      %508 = vmatpush1.xpose.msra.mxu0 0.0
      %509 = vmatprep.subr.mxu0 0.0
      %510 = vmatpush1.xpose.msra.mxu0 0.0
      %511 = vmatprep.subr.mxu0 0.0
      %512 = vmatpush1.xpose.msra.mxu0 0.0
      %513 = vmatprep.subr.mxu0 0.0
      %514 = vmatpush1.xpose.msra.mxu0 0.0
      %515 = vmatprep.subr.mxu0 0.0
      %516 = vmatpush1.xpose.msra.mxu0 0.0
      %517 = vmatprep.subr.mxu0 0.0
      %518 = vmatpush1.xpose.msra.mxu0 0.0
      %519 = vmatprep.mubr.f32.mxu0 0.0
      %520 = vmatmul.mubr.f32.gmra.mrb[0].mxu0 %v444
      %v521 = vpop.f32.mrb[0].mxu0
      %v522 = vadd.f32 0.0, %v521
      %v523 = vpop.f32.mrb[0].mxu0
      %524 = vmatprep.mubr.f32.mxu0 0.0
      %525 = vmatmul.mubr.f32.gmra.mrb[0].mxu0 %v447
      %v526 = vpop.f32.mrb[0].mxu0
      %v527 = vadd.f32 0.0, %v526
      %v528 = vpop.f32.mrb[0].mxu0
      %529 = vdwg.mxu0
      %vm530 = vcmask 80896
      %v531 = vsel %vm530, %v522, -inf
      %532 = vmax.xlane.f32.xlu0 %v531
      %v533 = vpop.xlane.xlu0 %532
      %vm534 = vcmask 74752
      %v535 = vsel %vm534, %v527, -inf
      %536 = vmax.xlane.f32.xlu0 %v535
      %v537 = vpop.xlane.xlu0 %536
      %v538 = vsub.f32 %v522, %v533
      %v539 = vsub.f32 %v527, %v537
      %v540 = vmul.f32 %v538, 1.442695
      %v541 = vpow.pop %v540
      %v542 = vmul.f32 %v539, 1.442695
      %v543 = vpow.pop %v542
      %v544 = vsel %vm530, %v541, 0.0
      %545 = vadd.xlane.f32.xlu0 %v544
      %v546 = vpop.xlane.xlu0 %545
      %v547 = vsel %vm534, %v543, 0.0
      %548 = vadd.xlane.f32.xlu0 %v547
      %v549 = vpop.xlane.xlu0 %548
      %v550 = vrcp.pop %v546
      %v551 = vrcp.pop %v549
      %v552 = vmul.f32 %v541, %v550
      %v553 = vmul.f32 %v543, %v551
      %554 = vrot.lane.b32.xlu0 %v434, 96
      %v555 = vpop.permute.xlu0 %554
      %556 = vrot.lane.b32.xlu0 %v439, 96
      %v557 = vpop.permute.xlu0 %556
      %v560 = vsel %vm530, %v552, 0
      %v563 = vsel %vm530, %v553, 0
      %vm565 = vcmask 1041408
      %v566 = vsel %vm565, %v557, 0
      %568 = vmatprep.subr.mxu0 0.0
      %569 = vmatpush1.msra.mxu0 %v555
      %570 = vmatprep.subr.mxu0 0.0
      %571 = vmatpush1.msra.mxu0 %v566
      %572 = vmatprep.subr.mxu0 0.0
      %573 = vmatpush1.msra.mxu0 0.0
      %574 = vmatprep.subr.mxu0 0.0
      %575 = vmatpush1.msra.mxu0 0.0
      %576 = vmatprep.subr.mxu0 0.0
      %577 = vmatpush1.msra.mxu0 0.0
      %578 = vmatprep.subr.mxu0 0.0
      %579 = vmatpush1.msra.mxu0 0.0
      %580 = vmatprep.subr.mxu0 0.0
      %581 = vmatpush1.msra.mxu0 0.0
      %582 = vmatprep.subr.mxu0 0.0
      %583 = vmatpush1.msra.mxu0 0.0
      %584 = vmatprep.subr.mxu0 0.0
      %585 = vmatpush1.msra.mxu0 0.0
      %586 = vmatprep.subr.mxu0 0.0
      %587 = vmatpush1.msra.mxu0 0.0
      %588 = vmatprep.subr.mxu0 0.0
      %589 = vmatpush1.msra.mxu0 0.0
      %590 = vmatprep.subr.mxu0 0.0
      %591 = vmatpush1.msra.mxu0 0.0
      %592 = vmatprep.subr.mxu0 0.0
      %593 = vmatpush1.msra.mxu0 0.0
      %594 = vmatprep.subr.mxu0 0.0
      %595 = vmatpush1.msra.mxu0 0.0
      %596 = vmatprep.subr.mxu0 0.0
      %597 = vmatpush1.msra.mxu0 0.0
      %598 = vmatprep.subr.mxu0 0.0
      %599 = vmatpush1.msra.mxu0 0.0
      %600 = vmatprep.subr.mxu0 0.0
      %601 = vmatpush1.msra.mxu0 0.0
      %602 = vmatprep.subr.mxu0 0.0
      %603 = vmatpush1.msra.mxu0 0.0
      %604 = vmatprep.subr.mxu0 0.0
      %605 = vmatpush1.msra.mxu0 0.0
      %606 = vmatprep.subr.mxu0 0.0
      %607 = vmatpush1.msra.mxu0 0.0
      %608 = vmatprep.subr.mxu0 0.0
      %609 = vmatpush1.msra.mxu0 0.0
      %610 = vmatprep.subr.mxu0 0.0
      %611 = vmatpush1.msra.mxu0 0.0
      %612 = vmatprep.subr.mxu0 0.0
      %613 = vmatpush1.msra.mxu0 0.0
      %614 = vmatprep.subr.mxu0 0.0
      %615 = vmatpush1.msra.mxu0 0.0
      %616 = vmatprep.subr.mxu0 0.0
      %617 = vmatpush1.msra.mxu0 0.0
      %618 = vmatprep.subr.mxu0 0.0
      %619 = vmatpush1.msra.mxu0 0.0
      %620 = vmatprep.subr.mxu0 0.0
      %621 = vmatpush1.msra.mxu0 0.0
      %622 = vmatprep.subr.mxu0 0.0
      %623 = vmatpush1.msra.mxu0 0.0
      %624 = vmatprep.subr.mxu0 0.0
      %625 = vmatpush1.msra.mxu0 0.0
      %626 = vmatprep.subr.mxu0 0.0
      %627 = vmatpush1.msra.mxu0 0.0
      %628 = vmatprep.subr.mxu0 0.0
      %629 = vmatpush1.msra.mxu0 0.0
      %630 = vmatprep.subr.mxu0 0.0
      %631 = vmatpush1.msra.mxu0 0.0
      %632 = vmatprep.mubr.f32.mxu0 0.0
      %633 = vmatmul.mubr.f32.gmra.mrb[0].mxu0 %v560
      %v634 = vpop.f32.mrb[0].mxu0
      %v635 = vadd.f32 0.0, %v634
      %v636 = vpop.f32.mrb[0].mxu0
      %637 = vmatprep.mubr.f32.mxu0 0.0
      %638 = vmatmul.mubr.f32.gmra.mrb[0].mxu0 %v563
      %v639 = vpop.f32.mrb[0].mxu0
      %v640 = vadd.f32 0.0, %v639
      %v641 = vpop.f32.mrb[0].mxu0
      %642 = vdwg.mxu0
      %643 = vrot.lane.b32.xlu0 %v333, 120
      %v644 = vpop.permute.xlu0 %643
      %645 = vrot.lane.b32.xlu0 %v338, 120
      %v646 = vpop.permute.xlu0 %645
      %647 = vrot.lane.b32.xlu0 %v434, 120
      %v648 = vpop.permute.xlu0 %647
      %649 = vrot.lane.b32.xlu0 %v439, 120
      %v650 = vpop.permute.xlu0 %649
      %v651 = vsel %vm442, %v644, 0
      %v653 = vsel %vm442, %v646, 0
      %v655 = vsel %vm442, %v648, 0
      %v657 = vsel %vm442, %v650, 0
      %659 = vmatprep.subr.mxu0 0.0
      %660 = vmatpush1.xpose.msra.mxu0 %v655
      %661 = vmatprep.subr.mxu0 0.0
      %662 = vmatpush1.xpose.msra.mxu0 %v657
      %663 = vmatprep.subr.mxu0 0.0
      %664 = vmatpush1.xpose.msra.mxu0 0.0
      %665 = vmatprep.subr.mxu0 0.0
      %666 = vmatpush1.xpose.msra.mxu0 0.0
      %667 = vmatprep.subr.mxu0 0.0
      %668 = vmatpush1.xpose.msra.mxu0 0.0
      %669 = vmatprep.subr.mxu0 0.0
      %670 = vmatpush1.xpose.msra.mxu0 0.0
      %671 = vmatprep.subr.mxu0 0.0
      %672 = vmatpush1.xpose.msra.mxu0 0.0
      %673 = vmatprep.subr.mxu0 0.0
      %674 = vmatpush1.xpose.msra.mxu0 0.0
      %675 = vmatprep.subr.mxu0 0.0
      %676 = vmatpush1.xpose.msra.mxu0 0.0
      %677 = vmatprep.subr.mxu0 0.0
      %678 = vmatpush1.xpose.msra.mxu0 0.0
      %679 = vmatprep.subr.mxu0 0.0
      %680 = vmatpush1.xpose.msra.mxu0 0.0
      %681 = vmatprep.subr.mxu0 0.0
      %682 = vmatpush1.xpose.msra.mxu0 0.0
      %683 = vmatprep.subr.mxu0 0.0
      %684 = vmatpush1.xpose.msra.mxu0 0.0
      %685 = vmatprep.subr.mxu0 0.0
      %686 = vmatpush1.xpose.msra.mxu0 0.0
      %687 = vmatprep.subr.mxu0 0.0
      %688 = vmatpush1.xpose.msra.mxu0 0.0
      %689 = vmatprep.subr.mxu0 0.0
      %690 = vmatpush1.xpose.msra.mxu0 0.0
      %691 = vmatprep.subr.mxu0 0.0
      %692 = vmatpush1.xpose.msra.mxu0 0.0
      %693 = vmatprep.subr.mxu0 0.0
      %694 = vmatpush1.xpose.msra.mxu0 0.0
      %695 = vmatprep.subr.mxu0 0.0
      %696 = vmatpush1.xpose.msra.mxu0 0.0
      %697 = vmatprep.subr.mxu0 0.0
      %698 = vmatpush1.xpose.msra.mxu0 0.0
      %699 = vmatprep.subr.mxu0 0.0
      %700 = vmatpush1.xpose.msra.mxu0 0.0
      %701 = vmatprep.subr.mxu0 0.0
      %702 = vmatpush1.xpose.msra.mxu0 0.0
      %703 = vmatprep.subr.mxu0 0.0
      %704 = vmatpush1.xpose.msra.mxu0 0.0
      %705 = vmatprep.subr.mxu0 0.0
      %706 = vmatpush1.xpose.msra.mxu0 0.0
      %707 = vmatprep.subr.mxu0 0.0
      %708 = vmatpush1.xpose.msra.mxu0 0.0
      %709 = vmatprep.subr.mxu0 0.0
      %710 = vmatpush1.xpose.msra.mxu0 0.0
      %711 = vmatprep.subr.mxu0 0.0
      %712 = vmatpush1.xpose.msra.mxu0 0.0
      %713 = vmatprep.subr.mxu0 0.0
      %714 = vmatpush1.xpose.msra.mxu0 0.0
      %715 = vmatprep.subr.mxu0 0.0
      %716 = vmatpush1.xpose.msra.mxu0 0.0
      %717 = vmatprep.subr.mxu0 0.0
      %718 = vmatpush1.xpose.msra.mxu0 0.0
      %719 = vmatprep.subr.mxu0 0.0
      %720 = vmatpush1.xpose.msra.mxu0 0.0
      %721 = vmatprep.subr.mxu0 0.0
      %722 = vmatpush1.xpose.msra.mxu0 0.0
      %723 = vmatprep.mubr.f32.mxu0 0.0
      %724 = vmatmul.mubr.f32.gmra.mrb[0].mxu0 %v651
      %v725 = vpop.f32.mrb[0].mxu0
      %v726 = vadd.f32 0.0, %v725
      %v727 = vpop.f32.mrb[0].mxu0
      %728 = vmatprep.mubr.f32.mxu0 0.0
      %729 = vmatmul.mubr.f32.gmra.mrb[0].mxu0 %v653
      %v730 = vpop.f32.mrb[0].mxu0
      %v731 = vadd.f32 0.0, %v730
      %v732 = vpop.f32.mrb[0].mxu0
      %733 = vdwg.mxu0
      %v734 = vsel %vm530, %v726, -inf
      %735 = vmax.xlane.f32.xlu0 %v734
      %v736 = vpop.xlane.xlu0 %735
      %v737 = vsel %vm534, %v731, -inf
      %738 = vmax.xlane.f32.xlu0 %v737
      %v739 = vpop.xlane.xlu0 %738
      %v740 = vsub.f32 %v726, %v736
      %v741 = vsub.f32 %v731, %v739
      %v742 = vmul.f32 %v740, 1.442695
      %v743 = vpow.pop %v742
      %v744 = vmul.f32 %v741, 1.442695
      %v745 = vpow.pop %v744
      %v746 = vsel %vm530, %v743, 0.0
      %747 = vadd.xlane.f32.xlu0 %v746
      %v748 = vpop.xlane.xlu0 %747
      %v749 = vsel %vm534, %v745, 0.0
      %750 = vadd.xlane.f32.xlu0 %v749
      %v751 = vpop.xlane.xlu0 %750
      %v752 = vrcp.pop %v748
      %v753 = vrcp.pop %v751
      %v754 = vmul.f32 %v743, %v752
      %v755 = vmul.f32 %v745, %v753
      %756 = vrot.lane.b32.xlu0 %v434, 88
      %v757 = vpop.permute.xlu0 %756
      %758 = vrot.lane.b32.xlu0 %v439, 88
      %v759 = vpop.permute.xlu0 %758
      %v762 = vsel %vm530, %v754, 0
      %v765 = vsel %vm530, %v755, 0
      %v767 = vsel %vm565, %v759, 0
      %769 = vmatprep.subr.mxu0 0.0
      %770 = vmatpush1.msra.mxu0 %v757
      %771 = vmatprep.subr.mxu0 0.0
      %772 = vmatpush1.msra.mxu0 %v767
      %773 = vmatprep.subr.mxu0 0.0
      %774 = vmatpush1.msra.mxu0 0.0
      %775 = vmatprep.subr.mxu0 0.0
      %776 = vmatpush1.msra.mxu0 0.0
      %777 = vmatprep.subr.mxu0 0.0
      %778 = vmatpush1.msra.mxu0 0.0
      %779 = vmatprep.subr.mxu0 0.0
      %780 = vmatpush1.msra.mxu0 0.0
      %781 = vmatprep.subr.mxu0 0.0
      %782 = vmatpush1.msra.mxu0 0.0
      %783 = vmatprep.subr.mxu0 0.0
      %784 = vmatpush1.msra.mxu0 0.0
      %785 = vmatprep.subr.mxu0 0.0
      %786 = vmatpush1.msra.mxu0 0.0
      %787 = vmatprep.subr.mxu0 0.0
      %788 = vmatpush1.msra.mxu0 0.0
      %789 = vmatprep.subr.mxu0 0.0
      %790 = vmatpush1.msra.mxu0 0.0
      %791 = vmatprep.subr.mxu0 0.0
      %792 = vmatpush1.msra.mxu0 0.0
      %793 = vmatprep.subr.mxu0 0.0
      %794 = vmatpush1.msra.mxu0 0.0
      %795 = vmatprep.subr.mxu0 0.0
      %796 = vmatpush1.msra.mxu0 0.0
      %797 = vmatprep.subr.mxu0 0.0
      %798 = vmatpush1.msra.mxu0 0.0
      %799 = vmatprep.subr.mxu0 0.0
      %800 = vmatpush1.msra.mxu0 0.0
      %801 = vmatprep.subr.mxu0 0.0
      %802 = vmatpush1.msra.mxu0 0.0
      %803 = vmatprep.subr.mxu0 0.0
      %804 = vmatpush1.msra.mxu0 0.0
      %805 = vmatprep.subr.mxu0 0.0
      %806 = vmatpush1.msra.mxu0 0.0
      %807 = vmatprep.subr.mxu0 0.0
      %808 = vmatpush1.msra.mxu0 0.0
      %809 = vmatprep.subr.mxu0 0.0
      %810 = vmatpush1.msra.mxu0 0.0
      %811 = vmatprep.subr.mxu0 0.0
      %812 = vmatpush1.msra.mxu0 0.0
      %813 = vmatprep.subr.mxu0 0.0
      %814 = vmatpush1.msra.mxu0 0.0
      %815 = vmatprep.subr.mxu0 0.0
      %816 = vmatpush1.msra.mxu0 0.0
      %817 = vmatprep.subr.mxu0 0.0
      %818 = vmatpush1.msra.mxu0 0.0
      %819 = vmatprep.subr.mxu0 0.0
      %820 = vmatpush1.msra.mxu0 0.0
      %821 = vmatprep.subr.mxu0 0.0
      %822 = vmatpush1.msra.mxu0 0.0
      %823 = vmatprep.subr.mxu0 0.0
      %824 = vmatpush1.msra.mxu0 0.0
      %825 = vmatprep.subr.mxu0 0.0
      %826 = vmatpush1.msra.mxu0 0.0
      %827 = vmatprep.subr.mxu0 0.0
      %828 = vmatpush1.msra.mxu0 0.0
      %829 = vmatprep.subr.mxu0 0.0
      %830 = vmatpush1.msra.mxu0 0.0
      %831 = vmatprep.subr.mxu0 0.0
      %832 = vmatpush1.msra.mxu0 0.0
      %833 = vmatprep.mubr.f32.mxu0 0.0
      %834 = vmatmul.mubr.f32.gmra.mrb[0].mxu0 %v762
      %v835 = vpop.f32.mrb[0].mxu0
      %v836 = vadd.f32 0.0, %v835
      %v837 = vpop.f32.mrb[0].mxu0
      %838 = vmatprep.mubr.f32.mxu0 0.0
      %839 = vmatmul.mubr.f32.gmra.mrb[0].mxu0 %v765
      %v840 = vpop.f32.mrb[0].mxu0
      %v841 = vadd.f32 0.0, %v840
      %v842 = vpop.f32.mrb[0].mxu0
      %843 = vdwg.mxu0
      %844 = vrot.lane.b32.xlu0 %v252, 32
      %v845 = vpop.permute.xlu0 %844
      %v848 = vsel %vm442, %v836, 0
      %v851 = vsel %vm442, %v841, 0
      %853 = vmatprep.subr.mxu0 0.0
      %854 = vmatpush1.msra.mxu0 %v845
      %855 = vmatprep.subr.mxu0 0.0
      %856 = vmatpush1.msra.mxu0 0.0
      %857 = vmatprep.subr.mxu0 0.0
      %858 = vmatpush1.msra.mxu0 0.0
      %859 = vmatprep.subr.mxu0 0.0
      %860 = vmatpush1.msra.mxu0 0.0
      %861 = vmatprep.subr.mxu0 0.0
      %862 = vmatpush1.msra.mxu0 0.0
      %863 = vmatprep.subr.mxu0 0.0
      %864 = vmatpush1.msra.mxu0 0.0
      %865 = vmatprep.subr.mxu0 0.0
      %866 = vmatpush1.msra.mxu0 0.0
      %867 = vmatprep.subr.mxu0 0.0
      %868 = vmatpush1.msra.mxu0 0.0
      %869 = vmatprep.subr.mxu0 0.0
      %870 = vmatpush1.msra.mxu0 0.0
      %871 = vmatprep.subr.mxu0 0.0
      %872 = vmatpush1.msra.mxu0 0.0
      %873 = vmatprep.subr.mxu0 0.0
      %874 = vmatpush1.msra.mxu0 0.0
      %875 = vmatprep.subr.mxu0 0.0
      %876 = vmatpush1.msra.mxu0 0.0
      %877 = vmatprep.subr.mxu0 0.0
      %878 = vmatpush1.msra.mxu0 0.0
      %879 = vmatprep.subr.mxu0 0.0
      %880 = vmatpush1.msra.mxu0 0.0
      %881 = vmatprep.subr.mxu0 0.0
      %882 = vmatpush1.msra.mxu0 0.0
      %883 = vmatprep.subr.mxu0 0.0
      %884 = vmatpush1.msra.mxu0 0.0
      %885 = vmatprep.subr.mxu0 0.0
      %886 = vmatpush1.msra.mxu0 0.0
      %887 = vmatprep.subr.mxu0 0.0
      %888 = vmatpush1.msra.mxu0 0.0
      %889 = vmatprep.subr.mxu0 0.0
      %890 = vmatpush1.msra.mxu0 0.0
      %891 = vmatprep.subr.mxu0 0.0
      %892 = vmatpush1.msra.mxu0 0.0
      %893 = vmatprep.subr.mxu0 0.0
      %894 = vmatpush1.msra.mxu0 0.0
      %895 = vmatprep.subr.mxu0 0.0
      %896 = vmatpush1.msra.mxu0 0.0
      %897 = vmatprep.subr.mxu0 0.0
      %898 = vmatpush1.msra.mxu0 0.0
      %899 = vmatprep.subr.mxu0 0.0
      %900 = vmatpush1.msra.mxu0 0.0
      %901 = vmatprep.subr.mxu0 0.0
      %902 = vmatpush1.msra.mxu0 0.0
      %903 = vmatprep.subr.mxu0 0.0
      %904 = vmatpush1.msra.mxu0 0.0
      %905 = vmatprep.subr.mxu0 0.0
      %906 = vmatpush1.msra.mxu0 0.0
      %907 = vmatprep.subr.mxu0 0.0
      %908 = vmatpush1.msra.mxu0 0.0
      %909 = vmatprep.subr.mxu0 0.0
      %910 = vmatpush1.msra.mxu0 0.0
      %911 = vmatprep.subr.mxu0 0.0
      %912 = vmatpush1.msra.mxu0 0.0
      %913 = vmatprep.subr.mxu0 0.0
      %914 = vmatpush1.msra.mxu0 0.0
      %915 = vmatprep.subr.mxu0 0.0
      %916 = vmatpush1.msra.mxu0 0.0
      %917 = vmatprep.mubr.f32.mxu0 0.0
      %918 = vmatmul.mubr.f32.gmra.mrb[0].mxu0 %v848
      %v919 = vpop.f32.mrb[0].mxu0
      %v920 = vadd.f32 0.0, %v919
      %v921 = vpop.f32.mrb[0].mxu0
      %922 = vmatprep.mubr.f32.mxu0 0.0
      %923 = vmatmul.mubr.f32.gmra.mrb[0].mxu0 %v851
      %v924 = vpop.f32.mrb[0].mxu0
      %v925 = vadd.f32 0.0, %v924
      %v926 = vpop.f32.mrb[0].mxu0
      %927 = vdwg.mxu0
      %928 = vrot.lane.b32.xlu0 %v251, 32
      %v929 = vpop.permute.xlu0 %928
      %v932 = vsel %vm442, %v635, 0
      %v935 = vsel %vm442, %v640, 0
      %937 = vmatprep.subr.mxu0 0.0
      %938 = vmatpush1.msra.mxu0 %v929
      %939 = vmatprep.subr.mxu0 0.0
      %940 = vmatpush1.msra.mxu0 0.0
      %941 = vmatprep.subr.mxu0 0.0
      %942 = vmatpush1.msra.mxu0 0.0
      %943 = vmatprep.subr.mxu0 0.0
      %944 = vmatpush1.msra.mxu0 0.0
      %945 = vmatprep.subr.mxu0 0.0
      %946 = vmatpush1.msra.mxu0 0.0
      %947 = vmatprep.subr.mxu0 0.0
      %948 = vmatpush1.msra.mxu0 0.0
      %949 = vmatprep.subr.mxu0 0.0
      %950 = vmatpush1.msra.mxu0 0.0
      %951 = vmatprep.subr.mxu0 0.0
      %952 = vmatpush1.msra.mxu0 0.0
      %953 = vmatprep.subr.mxu0 0.0
      %954 = vmatpush1.msra.mxu0 0.0
      %955 = vmatprep.subr.mxu0 0.0
      %956 = vmatpush1.msra.mxu0 0.0
      %957 = vmatprep.subr.mxu0 0.0
      %958 = vmatpush1.msra.mxu0 0.0
      %959 = vmatprep.subr.mxu0 0.0
      %960 = vmatpush1.msra.mxu0 0.0
      %961 = vmatprep.subr.mxu0 0.0
      %962 = vmatpush1.msra.mxu0 0.0
      %963 = vmatprep.subr.mxu0 0.0
      %964 = vmatpush1.msra.mxu0 0.0
      %965 = vmatprep.subr.mxu0 0.0
      %966 = vmatpush1.msra.mxu0 0.0
      %967 = vmatprep.subr.mxu0 0.0
      %968 = vmatpush1.msra.mxu0 0.0
      %969 = vmatprep.subr.mxu0 0.0
      %970 = vmatpush1.msra.mxu0 0.0
      %971 = vmatprep.subr.mxu0 0.0
      %972 = vmatpush1.msra.mxu0 0.0
      %973 = vmatprep.subr.mxu0 0.0
      %974 = vmatpush1.msra.mxu0 0.0
      %975 = vmatprep.subr.mxu0 0.0
      %976 = vmatpush1.msra.mxu0 0.0
      %977 = vmatprep.subr.mxu0 0.0
      %978 = vmatpush1.msra.mxu0 0.0
      %979 = vmatprep.subr.mxu0 0.0
      %980 = vmatpush1.msra.mxu0 0.0
      %981 = vmatprep.subr.mxu0 0.0
      %982 = vmatpush1.msra.mxu0 0.0
      %983 = vmatprep.subr.mxu0 0.0
      %984 = vmatpush1.msra.mxu0 0.0
      %985 = vmatprep.subr.mxu0 0.0
      %986 = vmatpush1.msra.mxu0 0.0
      %987 = vmatprep.subr.mxu0 0.0
      %988 = vmatpush1.msra.mxu0 0.0
      %989 = vmatprep.subr.mxu0 0.0
      %990 = vmatpush1.msra.mxu0 0.0
      %991 = vmatprep.subr.mxu0 0.0
      %992 = vmatpush1.msra.mxu0 0.0
      %993 = vmatprep.subr.mxu0 0.0
      %994 = vmatpush1.msra.mxu0 0.0
      %995 = vmatprep.subr.mxu0 0.0
      %996 = vmatpush1.msra.mxu0 0.0
      %997 = vmatprep.subr.mxu0 0.0
      %998 = vmatpush1.msra.mxu0 0.0
      %999 = vmatprep.subr.mxu0 0.0
      %1000 = vmatpush1.msra.mxu0 0.0
      %1001 = vmatprep.mubr.f32.mxu0 0.0
      %1002 = vmatmul.mubr.f32.gmra.mrb[0].mxu0 %v932
      %v1003 = vpop.f32.mrb[0].mxu0
      %v1004 = vadd.f32 %v920, %v1003
      %v1005 = vpop.f32.mrb[0].mxu0
      %1006 = vmatprep.mubr.f32.mxu0 0.0
      %1007 = vmatmul.mubr.f32.gmra.mrb[0].mxu0 %v935
      %v1008 = vpop.f32.mrb[0].mxu0
      %v1009 = vadd.f32 %v925, %v1008
      %v1010 = vpop.f32.mrb[0].mxu0
      %1011 = vdwg.mxu0
      %1012 = vrot.lane.b32.xlu0 %v333, 112
      %v1013 = vpop.permute.xlu0 %1012
      %1014 = vrot.lane.b32.xlu0 %v338, 112
      %v1015 = vpop.permute.xlu0 %1014
      %1016 = vrot.lane.b32.xlu0 %v434, 112
      %v1017 = vpop.permute.xlu0 %1016
      %1018 = vrot.lane.b32.xlu0 %v439, 112
      %v1019 = vpop.permute.xlu0 %1018
      %v1020 = vsel %vm442, %v1013, 0
      %v1022 = vsel %vm442, %v1015, 0
      %v1024 = vsel %vm442, %v1017, 0
      %v1026 = vsel %vm442, %v1019, 0
      %1028 = vmatprep.subr.mxu0 0.0
      %1029 = vmatpush1.xpose.msra.mxu0 %v1024
      %1030 = vmatprep.subr.mxu0 0.0
      %1031 = vmatpush1.xpose.msra.mxu0 %v1026
      %1032 = vmatprep.subr.mxu0 0.0
      %1033 = vmatpush1.xpose.msra.mxu0 0.0
      %1034 = vmatprep.subr.mxu0 0.0
      %1035 = vmatpush1.xpose.msra.mxu0 0.0
      %1036 = vmatprep.subr.mxu0 0.0
      %1037 = vmatpush1.xpose.msra.mxu0 0.0
      %1038 = vmatprep.subr.mxu0 0.0
      %1039 = vmatpush1.xpose.msra.mxu0 0.0
      %1040 = vmatprep.subr.mxu0 0.0
      %1041 = vmatpush1.xpose.msra.mxu0 0.0
      %1042 = vmatprep.subr.mxu0 0.0
      %1043 = vmatpush1.xpose.msra.mxu0 0.0
      %1044 = vmatprep.subr.mxu0 0.0
      %1045 = vmatpush1.xpose.msra.mxu0 0.0
      %1046 = vmatprep.subr.mxu0 0.0
      %1047 = vmatpush1.xpose.msra.mxu0 0.0
      %1048 = vmatprep.subr.mxu0 0.0
      %1049 = vmatpush1.xpose.msra.mxu0 0.0
      %1050 = vmatprep.subr.mxu0 0.0
      %1051 = vmatpush1.xpose.msra.mxu0 0.0
      %1052 = vmatprep.subr.mxu0 0.0
      %1053 = vmatpush1.xpose.msra.mxu0 0.0
      %1054 = vmatprep.subr.mxu0 0.0
      %1055 = vmatpush1.xpose.msra.mxu0 0.0
      %1056 = vmatprep.subr.mxu0 0.0
      %1057 = vmatpush1.xpose.msra.mxu0 0.0
      %1058 = vmatprep.subr.mxu0 0.0
      %1059 = vmatpush1.xpose.msra.mxu0 0.0
      %1060 = vmatprep.subr.mxu0 0.0
      %1061 = vmatpush1.xpose.msra.mxu0 0.0
      %1062 = vmatprep.subr.mxu0 0.0
      %1063 = vmatpush1.xpose.msra.mxu0 0.0
      %1064 = vmatprep.subr.mxu0 0.0
      %1065 = vmatpush1.xpose.msra.mxu0 0.0
      %1066 = vmatprep.subr.mxu0 0.0
      %1067 = vmatpush1.xpose.msra.mxu0 0.0
      %1068 = vmatprep.subr.mxu0 0.0
      %1069 = vmatpush1.xpose.msra.mxu0 0.0
      %1070 = vmatprep.subr.mxu0 0.0
      %1071 = vmatpush1.xpose.msra.mxu0 0.0
      %1072 = vmatprep.subr.mxu0 0.0
      %1073 = vmatpush1.xpose.msra.mxu0 0.0
      %1074 = vmatprep.subr.mxu0 0.0
      %1075 = vmatpush1.xpose.msra.mxu0 0.0
      %1076 = vmatprep.subr.mxu0 0.0
      %1077 = vmatpush1.xpose.msra.mxu0 0.0
      %1078 = vmatprep.subr.mxu0 0.0
      %1079 = vmatpush1.xpose.msra.mxu0 0.0
      %1080 = vmatprep.subr.mxu0 0.0
      %1081 = vmatpush1.xpose.msra.mxu0 0.0
      %1082 = vmatprep.subr.mxu0 0.0
      %1083 = vmatpush1.xpose.msra.mxu0 0.0
      %1084 = vmatprep.subr.mxu0 0.0
      %1085 = vmatpush1.xpose.msra.mxu0 0.0
      %1086 = vmatprep.subr.mxu0 0.0
      %1087 = vmatpush1.xpose.msra.mxu0 0.0
      %1088 = vmatprep.subr.mxu0 0.0
      %1089 = vmatpush1.xpose.msra.mxu0 0.0
      %1090 = vmatprep.subr.mxu0 0.0
      %1091 = vmatpush1.xpose.msra.mxu0 0.0
      %1092 = vmatprep.mubr.f32.mxu0 0.0
      %1093 = vmatmul.mubr.f32.gmra.mrb[0].mxu0 %v1020
      %v1094 = vpop.f32.mrb[0].mxu0
      %v1095 = vadd.f32 0.0, %v1094
      %v1096 = vpop.f32.mrb[0].mxu0
      %1097 = vmatprep.mubr.f32.mxu0 0.0
      %1098 = vmatmul.mubr.f32.gmra.mrb[0].mxu0 %v1022
      %v1099 = vpop.f32.mrb[0].mxu0
      %v1100 = vadd.f32 0.0, %v1099
      %v1101 = vpop.f32.mrb[0].mxu0
      %1102 = vdwg.mxu0
      %v1103 = vsel %vm530, %v1095, -inf
      %1104 = vmax.xlane.f32.xlu0 %v1103
      %v1105 = vpop.xlane.xlu0 %1104
      %v1106 = vsel %vm534, %v1100, -inf
      %1107 = vmax.xlane.f32.xlu0 %v1106
      %v1108 = vpop.xlane.xlu0 %1107
      %v1109 = vsub.f32 %v1095, %v1105
      %v1110 = vsub.f32 %v1100, %v1108
      %v1111 = vmul.f32 %v1109, 1.442695
      %v1112 = vpow.pop %v1111
      %v1113 = vmul.f32 %v1110, 1.442695
      %v1114 = vpow.pop %v1113
      %v1115 = vsel %vm530, %v1112, 0.0
      %1116 = vadd.xlane.f32.xlu0 %v1115
      %v1117 = vpop.xlane.xlu0 %1116
      %v1118 = vsel %vm534, %v1114, 0.0
      %1119 = vadd.xlane.f32.xlu0 %v1118
      %v1120 = vpop.xlane.xlu0 %1119
      %v1121 = vrcp.pop %v1117
      %v1122 = vrcp.pop %v1120
      %v1123 = vmul.f32 %v1112, %v1121
      %v1124 = vmul.f32 %v1114, %v1122
      %1125 = vrot.lane.b32.xlu0 %v434, 80
      %v1126 = vpop.permute.xlu0 %1125
      %1127 = vrot.lane.b32.xlu0 %v439, 80
      %v1128 = vpop.permute.xlu0 %1127
      %v1131 = vsel %vm530, %v1123, 0
      %v1134 = vsel %vm530, %v1124, 0
      %v1136 = vsel %vm565, %v1128, 0
      %1138 = vmatprep.subr.mxu0 0.0
      %1139 = vmatpush1.msra.mxu0 %v1126
      %1140 = vmatprep.subr.mxu0 0.0
      %1141 = vmatpush1.msra.mxu0 %v1136
      %1142 = vmatprep.subr.mxu0 0.0
      %1143 = vmatpush1.msra.mxu0 0.0
      %1144 = vmatprep.subr.mxu0 0.0
      %1145 = vmatpush1.msra.mxu0 0.0
      %1146 = vmatprep.subr.mxu0 0.0
      %1147 = vmatpush1.msra.mxu0 0.0
      %1148 = vmatprep.subr.mxu0 0.0
      %1149 = vmatpush1.msra.mxu0 0.0
      %1150 = vmatprep.subr.mxu0 0.0
      %1151 = vmatpush1.msra.mxu0 0.0
      %1152 = vmatprep.subr.mxu0 0.0
      %1153 = vmatpush1.msra.mxu0 0.0
      %1154 = vmatprep.subr.mxu0 0.0
      %1155 = vmatpush1.msra.mxu0 0.0
      %1156 = vmatprep.subr.mxu0 0.0
      %1157 = vmatpush1.msra.mxu0 0.0
      %1158 = vmatprep.subr.mxu0 0.0
      %1159 = vmatpush1.msra.mxu0 0.0
      %1160 = vmatprep.subr.mxu0 0.0
      %1161 = vmatpush1.msra.mxu0 0.0
      %1162 = vmatprep.subr.mxu0 0.0
      %1163 = vmatpush1.msra.mxu0 0.0
      %1164 = vmatprep.subr.mxu0 0.0
      %1165 = vmatpush1.msra.mxu0 0.0
      %1166 = vmatprep.subr.mxu0 0.0
      %1167 = vmatpush1.msra.mxu0 0.0
      %1168 = vmatprep.subr.mxu0 0.0
      %1169 = vmatpush1.msra.mxu0 0.0
      %1170 = vmatprep.subr.mxu0 0.0
      %1171 = vmatpush1.msra.mxu0 0.0
      %1172 = vmatprep.subr.mxu0 0.0
      %1173 = vmatpush1.msra.mxu0 0.0
      %1174 = vmatprep.subr.mxu0 0.0
      %1175 = vmatpush1.msra.mxu0 0.0
      %1176 = vmatprep.subr.mxu0 0.0
      %1177 = vmatpush1.msra.mxu0 0.0
      %1178 = vmatprep.subr.mxu0 0.0
      %1179 = vmatpush1.msra.mxu0 0.0
      %1180 = vmatprep.subr.mxu0 0.0
      %1181 = vmatpush1.msra.mxu0 0.0
      %1182 = vmatprep.subr.mxu0 0.0
      %1183 = vmatpush1.msra.mxu0 0.0
      %1184 = vmatprep.subr.mxu0 0.0
      %1185 = vmatpush1.msra.mxu0 0.0
      %1186 = vmatprep.subr.mxu0 0.0
      %1187 = vmatpush1.msra.mxu0 0.0
      %1188 = vmatprep.subr.mxu0 0.0
      %1189 = vmatpush1.msra.mxu0 0.0
      %1190 = vmatprep.subr.mxu0 0.0
      %1191 = vmatpush1.msra.mxu0 0.0
      %1192 = vmatprep.subr.mxu0 0.0
      %1193 = vmatpush1.msra.mxu0 0.0
      %1194 = vmatprep.subr.mxu0 0.0
      %1195 = vmatpush1.msra.mxu0 0.0
      %1196 = vmatprep.subr.mxu0 0.0
      %1197 = vmatpush1.msra.mxu0 0.0
      %1198 = vmatprep.subr.mxu0 0.0
      %1199 = vmatpush1.msra.mxu0 0.0
      %1200 = vmatprep.subr.mxu0 0.0
      %1201 = vmatpush1.msra.mxu0 0.0
      %1202 = vmatprep.mubr.f32.mxu0 0.0
      %1203 = vmatmul.mubr.f32.gmra.mrb[0].mxu0 %v1131
      %v1204 = vpop.f32.mrb[0].mxu0
      %v1205 = vadd.f32 0.0, %v1204
      %v1206 = vpop.f32.mrb[0].mxu0
      %1207 = vmatprep.mubr.f32.mxu0 0.0
      %1208 = vmatmul.mubr.f32.gmra.mrb[0].mxu0 %v1134
      %v1209 = vpop.f32.mrb[0].mxu0
      %v1210 = vadd.f32 0.0, %v1209
      %v1211 = vpop.f32.mrb[0].mxu0
      %1212 = vdwg.mxu0
      %1213 = vrot.lane.b32.xlu0 %v253, 32
      %v1214 = vpop.permute.xlu0 %1213
      %v1217 = vsel %vm442, %v1205, 0
      %v1220 = vsel %vm442, %v1210, 0
      %1222 = vmatprep.subr.mxu0 0.0
      %1223 = vmatpush1.msra.mxu0 %v1214
      %1224 = vmatprep.subr.mxu0 0.0
      %1225 = vmatpush1.msra.mxu0 0.0
      %1226 = vmatprep.subr.mxu0 0.0
      %1227 = vmatpush1.msra.mxu0 0.0
      %1228 = vmatprep.subr.mxu0 0.0
      %1229 = vmatpush1.msra.mxu0 0.0
      %1230 = vmatprep.subr.mxu0 0.0
      %1231 = vmatpush1.msra.mxu0 0.0
      %1232 = vmatprep.subr.mxu0 0.0
      %1233 = vmatpush1.msra.mxu0 0.0
      %1234 = vmatprep.subr.mxu0 0.0
      %1235 = vmatpush1.msra.mxu0 0.0
      %1236 = vmatprep.subr.mxu0 0.0
      %1237 = vmatpush1.msra.mxu0 0.0
      %1238 = vmatprep.subr.mxu0 0.0
      %1239 = vmatpush1.msra.mxu0 0.0
      %1240 = vmatprep.subr.mxu0 0.0
      %1241 = vmatpush1.msra.mxu0 0.0
      %1242 = vmatprep.subr.mxu0 0.0
      %1243 = vmatpush1.msra.mxu0 0.0
      %1244 = vmatprep.subr.mxu0 0.0
      %1245 = vmatpush1.msra.mxu0 0.0
      %1246 = vmatprep.subr.mxu0 0.0
      %1247 = vmatpush1.msra.mxu0 0.0
      %1248 = vmatprep.subr.mxu0 0.0
      %1249 = vmatpush1.msra.mxu0 0.0
      %1250 = vmatprep.subr.mxu0 0.0
      %1251 = vmatpush1.msra.mxu0 0.0
      %1252 = vmatprep.subr.mxu0 0.0
      %1253 = vmatpush1.msra.mxu0 0.0
      %1254 = vmatprep.subr.mxu0 0.0
      %1255 = vmatpush1.msra.mxu0 0.0
      %1256 = vmatprep.subr.mxu0 0.0
      %1257 = vmatpush1.msra.mxu0 0.0
      %1258 = vmatprep.subr.mxu0 0.0
      %1259 = vmatpush1.msra.mxu0 0.0
      %1260 = vmatprep.subr.mxu0 0.0
      %1261 = vmatpush1.msra.mxu0 0.0
      %1262 = vmatprep.subr.mxu0 0.0
      %1263 = vmatpush1.msra.mxu0 0.0
      %1264 = vmatprep.subr.mxu0 0.0
      %1265 = vmatpush1.msra.mxu0 0.0
      %1266 = vmatprep.subr.mxu0 0.0
      %1267 = vmatpush1.msra.mxu0 0.0
      %1268 = vmatprep.subr.mxu0 0.0
      %1269 = vmatpush1.msra.mxu0 0.0
      %1270 = vmatprep.subr.mxu0 0.0
      %1271 = vmatpush1.msra.mxu0 0.0
      %1272 = vmatprep.subr.mxu0 0.0
      %1273 = vmatpush1.msra.mxu0 0.0
      %1274 = vmatprep.subr.mxu0 0.0
      %1275 = vmatpush1.msra.mxu0 0.0
      %1276 = vmatprep.subr.mxu0 0.0
      %1277 = vmatpush1.msra.mxu0 0.0
      %1278 = vmatprep.subr.mxu0 0.0
      %1279 = vmatpush1.msra.mxu0 0.0
      %1280 = vmatprep.subr.mxu0 0.0
      %1281 = vmatpush1.msra.mxu0 0.0
      %1282 = vmatprep.subr.mxu0 0.0
      %1283 = vmatpush1.msra.mxu0 0.0
      %1284 = vmatprep.subr.mxu0 0.0
      %1285 = vmatpush1.msra.mxu0 0.0
      %1286 = vmatprep.mubr.f32.mxu0 0.0
      %1287 = vmatmul.mubr.f32.gmra.mrb[0].mxu0 %v1217
      %v1288 = vpop.f32.mrb[0].mxu0
      %v1289 = vadd.f32 0.0, %v1288
      %v1290 = vpop.f32.mrb[0].mxu0
      %1291 = vmatprep.mubr.f32.mxu0 0.0
      %1292 = vmatmul.mubr.f32.gmra.mrb[0].mxu0 %v1220
      %v1293 = vpop.f32.mrb[0].mxu0
      %v1294 = vadd.f32 0.0, %v1293
      %v1295 = vpop.f32.mrb[0].mxu0
      %1296 = vdwg.mxu0
      %v1297 = vadd.f32 %v1004, %v1289
      %v1298 = vadd.f32 %v1009, %v1294
      %1299 = vrot.lane.b32.xlu0 %v333, 104
      %v1300 = vpop.permute.xlu0 %1299
      %1301 = vrot.lane.b32.xlu0 %v338, 104
      %v1302 = vpop.permute.xlu0 %1301
      %1303 = vrot.lane.b32.xlu0 %v434, 104
      %v1304 = vpop.permute.xlu0 %1303
      %1305 = vrot.lane.b32.xlu0 %v439, 104
      %v1306 = vpop.permute.xlu0 %1305
      %v1307 = vsel %vm442, %v1300, 0
      %v1309 = vsel %vm442, %v1302, 0
      %v1311 = vsel %vm442, %v1304, 0
      %v1313 = vsel %vm442, %v1306, 0
      %1315 = vmatprep.subr.mxu0 0.0
      %1316 = vmatpush1.xpose.msra.mxu0 %v1311
      %1317 = vmatprep.subr.mxu0 0.0
      %1318 = vmatpush1.xpose.msra.mxu0 %v1313
      %1319 = vmatprep.subr.mxu0 0.0
      %1320 = vmatpush1.xpose.msra.mxu0 0.0
      %1321 = vmatprep.subr.mxu0 0.0
      %1322 = vmatpush1.xpose.msra.mxu0 0.0
      %1323 = vmatprep.subr.mxu0 0.0
      %1324 = vmatpush1.xpose.msra.mxu0 0.0
      %1325 = vmatprep.subr.mxu0 0.0
      %1326 = vmatpush1.xpose.msra.mxu0 0.0
      %1327 = vmatprep.subr.mxu0 0.0
      %1328 = vmatpush1.xpose.msra.mxu0 0.0
      %1329 = vmatprep.subr.mxu0 0.0
      %1330 = vmatpush1.xpose.msra.mxu0 0.0
      %1331 = vmatprep.subr.mxu0 0.0
      %1332 = vmatpush1.xpose.msra.mxu0 0.0
      %1333 = vmatprep.subr.mxu0 0.0
      %1334 = vmatpush1.xpose.msra.mxu0 0.0
      %1335 = vmatprep.subr.mxu0 0.0
      %1336 = vmatpush1.xpose.msra.mxu0 0.0
      %1337 = vmatprep.subr.mxu0 0.0
      %1338 = vmatpush1.xpose.msra.mxu0 0.0
      %1339 = vmatprep.subr.mxu0 0.0
      %1340 = vmatpush1.xpose.msra.mxu0 0.0
      %1341 = vmatprep.subr.mxu0 0.0
      %1342 = vmatpush1.xpose.msra.mxu0 0.0
      %1343 = vmatprep.subr.mxu0 0.0
      %1344 = vmatpush1.xpose.msra.mxu0 0.0
      %1345 = vmatprep.subr.mxu0 0.0
      %1346 = vmatpush1.xpose.msra.mxu0 0.0
      %1347 = vmatprep.subr.mxu0 0.0
      %1348 = vmatpush1.xpose.msra.mxu0 0.0
      %1349 = vmatprep.subr.mxu0 0.0
      %1350 = vmatpush1.xpose.msra.mxu0 0.0
      %1351 = vmatprep.subr.mxu0 0.0
      %1352 = vmatpush1.xpose.msra.mxu0 0.0
      %1353 = vmatprep.subr.mxu0 0.0
      %1354 = vmatpush1.xpose.msra.mxu0 0.0
      %1355 = vmatprep.subr.mxu0 0.0
      %1356 = vmatpush1.xpose.msra.mxu0 0.0
      %1357 = vmatprep.subr.mxu0 0.0
      %1358 = vmatpush1.xpose.msra.mxu0 0.0
      %1359 = vmatprep.subr.mxu0 0.0
      %1360 = vmatpush1.xpose.msra.mxu0 0.0
      %1361 = vmatprep.subr.mxu0 0.0
      %1362 = vmatpush1.xpose.msra.mxu0 0.0
      %1363 = vmatprep.subr.mxu0 0.0
      %1364 = vmatpush1.xpose.msra.mxu0 0.0
      %1365 = vmatprep.subr.mxu0 0.0
      %1366 = vmatpush1.xpose.msra.mxu0 0.0
      %1367 = vmatprep.subr.mxu0 0.0
      %1368 = vmatpush1.xpose.msra.mxu0 0.0
      %1369 = vmatprep.subr.mxu0 0.0
      %1370 = vmatpush1.xpose.msra.mxu0 0.0
      %1371 = vmatprep.subr.mxu0 0.0
      %1372 = vmatpush1.xpose.msra.mxu0 0.0
      %1373 = vmatprep.subr.mxu0 0.0
      %1374 = vmatpush1.xpose.msra.mxu0 0.0
      %1375 = vmatprep.subr.mxu0 0.0
      %1376 = vmatpush1.xpose.msra.mxu0 0.0
      %1377 = vmatprep.subr.mxu0 0.0
      %1378 = vmatpush1.xpose.msra.mxu0 0.0
      %1379 = vmatprep.mubr.f32.mxu0 0.0
      %1380 = vmatmul.mubr.f32.gmra.mrb[0].mxu0 %v1307
      %v1381 = vpop.f32.mrb[0].mxu0
      %v1382 = vadd.f32 0.0, %v1381
      %v1383 = vpop.f32.mrb[0].mxu0
      %1384 = vmatprep.mubr.f32.mxu0 0.0
      %1385 = vmatmul.mubr.f32.gmra.mrb[0].mxu0 %v1309
      %v1386 = vpop.f32.mrb[0].mxu0
      %v1387 = vadd.f32 0.0, %v1386
      %v1388 = vpop.f32.mrb[0].mxu0
      %1389 = vdwg.mxu0
      %v1390 = vsel %vm530, %v1382, -inf
      %1391 = vmax.xlane.f32.xlu0 %v1390
      %v1392 = vpop.xlane.xlu0 %1391
      %v1393 = vsel %vm534, %v1387, -inf
      %1394 = vmax.xlane.f32.xlu0 %v1393
      %v1395 = vpop.xlane.xlu0 %1394
      %v1396 = vsub.f32 %v1382, %v1392
      %v1397 = vsub.f32 %v1387, %v1395
      %v1398 = vmul.f32 %v1396, 1.442695
      %v1399 = vpow.pop %v1398
      %v1400 = vmul.f32 %v1397, 1.442695
      %v1401 = vpow.pop %v1400
      %v1402 = vsel %vm530, %v1399, 0.0
      %1403 = vadd.xlane.f32.xlu0 %v1402
      %v1404 = vpop.xlane.xlu0 %1403
      %v1405 = vsel %vm534, %v1401, 0.0
      %1406 = vadd.xlane.f32.xlu0 %v1405
      %v1407 = vpop.xlane.xlu0 %1406
      %v1408 = vrcp.pop %v1404
      %v1409 = vrcp.pop %v1407
      %v1410 = vmul.f32 %v1399, %v1408
      %v1411 = vmul.f32 %v1401, %v1409
      %1412 = vrot.lane.b32.xlu0 %v434, 72
      %v1413 = vpop.permute.xlu0 %1412
      %1414 = vrot.lane.b32.xlu0 %v439, 72
      %v1415 = vpop.permute.xlu0 %1414
      %v1418 = vsel %vm530, %v1410, 0
      %v1421 = vsel %vm530, %v1411, 0
      %v1423 = vsel %vm565, %v1415, 0
      %1425 = vmatprep.subr.mxu0 0.0
      %1426 = vmatpush1.msra.mxu0 %v1413
      %1427 = vmatprep.subr.mxu0 0.0
      %1428 = vmatpush1.msra.mxu0 %v1423
      %1429 = vmatprep.subr.mxu0 0.0
      %1430 = vmatpush1.msra.mxu0 0.0
      %1431 = vmatprep.subr.mxu0 0.0
      %1432 = vmatpush1.msra.mxu0 0.0
      %1433 = vmatprep.subr.mxu0 0.0
      %1434 = vmatpush1.msra.mxu0 0.0
      %1435 = vmatprep.subr.mxu0 0.0
      %1436 = vmatpush1.msra.mxu0 0.0
      %1437 = vmatprep.subr.mxu0 0.0
      %1438 = vmatpush1.msra.mxu0 0.0
      %1439 = vmatprep.subr.mxu0 0.0
      %1440 = vmatpush1.msra.mxu0 0.0
      %1441 = vmatprep.subr.mxu0 0.0
      %1442 = vmatpush1.msra.mxu0 0.0
      %1443 = vmatprep.subr.mxu0 0.0
      %1444 = vmatpush1.msra.mxu0 0.0
      %1445 = vmatprep.subr.mxu0 0.0
      %1446 = vmatpush1.msra.mxu0 0.0
      %1447 = vmatprep.subr.mxu0 0.0
      %1448 = vmatpush1.msra.mxu0 0.0
      %1449 = vmatprep.subr.mxu0 0.0
      %1450 = vmatpush1.msra.mxu0 0.0
      %1451 = vmatprep.subr.mxu0 0.0
      %1452 = vmatpush1.msra.mxu0 0.0
      %1453 = vmatprep.subr.mxu0 0.0
      %1454 = vmatpush1.msra.mxu0 0.0
      %1455 = vmatprep.subr.mxu0 0.0
      %1456 = vmatpush1.msra.mxu0 0.0
      %1457 = vmatprep.subr.mxu0 0.0
      %1458 = vmatpush1.msra.mxu0 0.0
      %1459 = vmatprep.subr.mxu0 0.0
      %1460 = vmatpush1.msra.mxu0 0.0
      %1461 = vmatprep.subr.mxu0 0.0
      %1462 = vmatpush1.msra.mxu0 0.0
      %1463 = vmatprep.subr.mxu0 0.0
      %1464 = vmatpush1.msra.mxu0 0.0
      %1465 = vmatprep.subr.mxu0 0.0
      %1466 = vmatpush1.msra.mxu0 0.0
      %1467 = vmatprep.subr.mxu0 0.0
      %1468 = vmatpush1.msra.mxu0 0.0
      %1469 = vmatprep.subr.mxu0 0.0
      %1470 = vmatpush1.msra.mxu0 0.0
      %1471 = vmatprep.subr.mxu0 0.0
      %1472 = vmatpush1.msra.mxu0 0.0
      %1473 = vmatprep.subr.mxu0 0.0
      %1474 = vmatpush1.msra.mxu0 0.0
      %1475 = vmatprep.subr.mxu0 0.0
      %1476 = vmatpush1.msra.mxu0 0.0
      %1477 = vmatprep.subr.mxu0 0.0
      %1478 = vmatpush1.msra.mxu0 0.0
      %1479 = vmatprep.subr.mxu0 0.0
      %1480 = vmatpush1.msra.mxu0 0.0
      %1481 = vmatprep.subr.mxu0 0.0
      %1482 = vmatpush1.msra.mxu0 0.0
      %1483 = vmatprep.subr.mxu0 0.0
      %1484 = vmatpush1.msra.mxu0 0.0
      %1485 = vmatprep.subr.mxu0 0.0
      %1486 = vmatpush1.msra.mxu0 0.0
      %1487 = vmatprep.subr.mxu0 0.0
      %1488 = vmatpush1.msra.mxu0 0.0
      %1489 = vmatprep.mubr.f32.mxu0 0.0
      %1490 = vmatmul.mubr.f32.gmra.mrb[0].mxu0 %v1418
      %v1491 = vpop.f32.mrb[0].mxu0
      %v1492 = vadd.f32 0.0, %v1491
      %v1493 = vpop.f32.mrb[0].mxu0
      %1494 = vmatprep.mubr.f32.mxu0 0.0
      %1495 = vmatmul.mubr.f32.gmra.mrb[0].mxu0 %v1421
      %v1496 = vpop.f32.mrb[0].mxu0
      %v1497 = vadd.f32 0.0, %v1496
      %v1498 = vpop.f32.mrb[0].mxu0
      %1499 = vdwg.mxu0
      %1500 = vrot.lane.b32.xlu0 %v254, 32
      %v1501 = vpop.permute.xlu0 %1500
      %v1504 = vsel %vm442, %v1492, 0
      %v1507 = vsel %vm442, %v1497, 0
      %1509 = vmatprep.subr.mxu0 0.0
      %1510 = vmatpush1.msra.mxu0 %v1501
      %1511 = vmatprep.subr.mxu0 0.0
      %1512 = vmatpush1.msra.mxu0 0.0
      %1513 = vmatprep.subr.mxu0 0.0
      %1514 = vmatpush1.msra.mxu0 0.0
      %1515 = vmatprep.subr.mxu0 0.0
      %1516 = vmatpush1.msra.mxu0 0.0
      %1517 = vmatprep.subr.mxu0 0.0
      %1518 = vmatpush1.msra.mxu0 0.0
      %1519 = vmatprep.subr.mxu0 0.0
      %1520 = vmatpush1.msra.mxu0 0.0
      %1521 = vmatprep.subr.mxu0 0.0
      %1522 = vmatpush1.msra.mxu0 0.0
      %1523 = vmatprep.subr.mxu0 0.0
      %1524 = vmatpush1.msra.mxu0 0.0
      %1525 = vmatprep.subr.mxu0 0.0
      %1526 = vmatpush1.msra.mxu0 0.0
      %1527 = vmatprep.subr.mxu0 0.0
      %1528 = vmatpush1.msra.mxu0 0.0
      %1529 = vmatprep.subr.mxu0 0.0
      %1530 = vmatpush1.msra.mxu0 0.0
      %1531 = vmatprep.subr.mxu0 0.0
      %1532 = vmatpush1.msra.mxu0 0.0
      %1533 = vmatprep.subr.mxu0 0.0
      %1534 = vmatpush1.msra.mxu0 0.0
      %1535 = vmatprep.subr.mxu0 0.0
      %1536 = vmatpush1.msra.mxu0 0.0
      %1537 = vmatprep.subr.mxu0 0.0
      %1538 = vmatpush1.msra.mxu0 0.0
      %1539 = vmatprep.subr.mxu0 0.0
      %1540 = vmatpush1.msra.mxu0 0.0
      %1541 = vmatprep.subr.mxu0 0.0
      %1542 = vmatpush1.msra.mxu0 0.0
      %1543 = vmatprep.subr.mxu0 0.0
      %1544 = vmatpush1.msra.mxu0 0.0
      %1545 = vmatprep.subr.mxu0 0.0
      %1546 = vmatpush1.msra.mxu0 0.0
      %1547 = vmatprep.subr.mxu0 0.0
      %1548 = vmatpush1.msra.mxu0 0.0
      %1549 = vmatprep.subr.mxu0 0.0
      %1550 = vmatpush1.msra.mxu0 0.0
      %1551 = vmatprep.subr.mxu0 0.0
      %1552 = vmatpush1.msra.mxu0 0.0
      %1553 = vmatprep.subr.mxu0 0.0
      %1554 = vmatpush1.msra.mxu0 0.0
      %1555 = vmatprep.subr.mxu0 0.0
      %1556 = vmatpush1.msra.mxu0 0.0
      %1557 = vmatprep.subr.mxu0 0.0
      %1558 = vmatpush1.msra.mxu0 0.0
      %1559 = vmatprep.subr.mxu0 0.0
      %1560 = vmatpush1.msra.mxu0 0.0
      %1561 = vmatprep.subr.mxu0 0.0
      %1562 = vmatpush1.msra.mxu0 0.0
      %1563 = vmatprep.subr.mxu0 0.0
      %1564 = vmatpush1.msra.mxu0 0.0
      %1565 = vmatprep.subr.mxu0 0.0
      %1566 = vmatpush1.msra.mxu0 0.0
      %1567 = vmatprep.subr.mxu0 0.0
      %1568 = vmatpush1.msra.mxu0 0.0
      %1569 = vmatprep.subr.mxu0 0.0
      %1570 = vmatpush1.msra.mxu0 0.0
      %1571 = vmatprep.subr.mxu0 0.0
      %1572 = vmatpush1.msra.mxu0 0.0
      %1573 = vmatprep.mubr.f32.mxu0 0.0
      %1574 = vmatmul.mubr.f32.gmra.mrb[0].mxu0 %v1504
      %v1575 = vpop.f32.mrb[0].mxu0
      %v1576 = vadd.f32 0.0, %v1575
      %v1577 = vpop.f32.mrb[0].mxu0
      %1578 = vmatprep.mubr.f32.mxu0 0.0
      %1579 = vmatmul.mubr.f32.gmra.mrb[0].mxu0 %v1507
      %v1580 = vpop.f32.mrb[0].mxu0
      %v1581 = vadd.f32 0.0, %v1580
      %v1582 = vpop.f32.mrb[0].mxu0
      %1583 = vdwg.mxu0
      %v1584 = vadd.f32 %v1297, %v1576
      %v1585 = vadd.f32 %v1298, %v1581
      %v1586 = vlaneseq
      %v1587 = vshrl.u32 %v1586, 7
      %v1588 = vsub.s32 1, %v1587
      %v1589 = vrot.slane %v250, %v1588
      %v1590 = vadd.f32 %v1584, %v1589
      %v1591 = vadd.f32 %v1585, %v1589
      %v1592 = vadd.f32 %v246, %v1590
      %v1593 = vadd.f32 %v247, %v1591
      %v1594 = vsel %vm259, %v1592, 0.0
      %1595 = vadd.xlane.f32.xlu0 %v1594
      %v1596 = vpop.xlane.xlu0 %1595
      %vm1597 = vcmask 254976
      %v1598 = vsel %vm1597, %v1593, 0.0
      %1599 = vadd.xlane.f32.xlu0 %v1598
      %v1600 = vpop.xlane.xlu0 %1599
      %v1601 = vrcp.pop 32.0
      %v1602 = vmul.f32 %v1596, %v1601
      %v1603 = vmul.f32 %v1600, %v1601
      %v1604 = vsub.f32 %v1592, %v1602
      %v1605 = vsub.f32 %v1593, %v1603
      %v1606 = vmul.f32 %v1604, %v1604
      %v1607 = vmul.f32 %v1605, %v1605
      %v1608 = vsel %vm259, %v1606, 0.0
      %1609 = vadd.xlane.f32.xlu0 %v1608
      %v1610 = vpop.xlane.xlu0 %1609
      %v1611 = vsel %vm1597, %v1607, 0.0
      %1612 = vadd.xlane.f32.xlu0 %v1611
      %v1613 = vpop.xlane.xlu0 %1612
      %v1614 = vmul.f32 %v1610, %v1601
      %v1615 = vmul.f32 %v1613, %v1601
      %v1616 = vadd.f32 %v1614, 1e-05
      %v1617 = vadd.f32 %v1615, 1e-05
      %v1618 = vrsqrt.pop %v1616
      %v1619 = vrsqrt.pop %v1617
      %v1620 = vmul.f32 %v1604, %v1618
      %v1621 = vmul.f32 %v1605, %v1619
      %v1622 = vlaneseq
      %v1623 = vshrl.u32 %v1622, 7
      %v1624 = vsub.s32 4, %v1623
      %v1625 = vrot.slane %v250, %v1624
      %v1626 = vmul.f32 %v1620, %v1625
      %v1627 = vmul.f32 %v1621, %v1625
      %v1628 = vlaneseq
      %v1629 = vshrl.u32 %v1628, 7
      %v1630 = vsub.s32 5, %v1629
      %v1631 = vrot.slane %v250, %v1630
      %v1632 = vadd.f32 %v1626, %v1631
      %v1633 = vadd.f32 %v1627, %v1631
      %v1634 = vld [vmem:[%s2 + $0x8] sm:$0xff]
      %v1635 = vld [vmem:[%s2 + $0x18] sm:$0xff]
      %v1636 = vld [vmem:[%s2 + $0x28] sm:$0xff]
      %v1637 = vld [vmem:[%s2 + $0x38] sm:$0xff]
      %v1638 = vlaneseq
      %v1639 = vshrl.u32 %v1638, 7
      %v1640 = vsub.s32 2, %v1639
      %v1641 = vrot.slane %v250, %v1640
      %v1643 = vsel %vm259, %v1632, 0
      %v1646 = vsel %vm259, %v1633, 0
      %1648 = vmatprep.subr.mxu0 0.0
      %1649 = vmatpush1.msra.mxu0 %v1634
      %1650 = vmatprep.subr.mxu0 0.0
      %1651 = vmatpush1.msra.mxu0 %v1635
      %1652 = vmatprep.subr.mxu0 0.0
      %1653 = vmatpush1.msra.mxu0 %v1636
      %1654 = vmatprep.subr.mxu0 0.0
      %1655 = vmatpush1.msra.mxu0 %v1637
      %1656 = vmatprep.subr.mxu0 0.0
      %1657 = vmatpush1.msra.mxu0 0.0
      %1658 = vmatprep.subr.mxu0 0.0
      %1659 = vmatpush1.msra.mxu0 0.0
      %1660 = vmatprep.subr.mxu0 0.0
      %1661 = vmatpush1.msra.mxu0 0.0
      %1662 = vmatprep.subr.mxu0 0.0
      %1663 = vmatpush1.msra.mxu0 0.0
      %1664 = vmatprep.subr.mxu0 0.0
      %1665 = vmatpush1.msra.mxu0 0.0
      %1666 = vmatprep.subr.mxu0 0.0
      %1667 = vmatpush1.msra.mxu0 0.0
      %1668 = vmatprep.subr.mxu0 0.0
      %1669 = vmatpush1.msra.mxu0 0.0
      %1670 = vmatprep.subr.mxu0 0.0
      %1671 = vmatpush1.msra.mxu0 0.0
      %1672 = vmatprep.subr.mxu0 0.0
      %1673 = vmatpush1.msra.mxu0 0.0
      %1674 = vmatprep.subr.mxu0 0.0
      %1675 = vmatpush1.msra.mxu0 0.0
      %1676 = vmatprep.subr.mxu0 0.0
      %1677 = vmatpush1.msra.mxu0 0.0
      %1678 = vmatprep.subr.mxu0 0.0
      %1679 = vmatpush1.msra.mxu0 0.0
      %1680 = vmatprep.subr.mxu0 0.0
      %1681 = vmatpush1.msra.mxu0 0.0
      %1682 = vmatprep.subr.mxu0 0.0
      %1683 = vmatpush1.msra.mxu0 0.0
      %1684 = vmatprep.subr.mxu0 0.0
      %1685 = vmatpush1.msra.mxu0 0.0
      %1686 = vmatprep.subr.mxu0 0.0
      %1687 = vmatpush1.msra.mxu0 0.0
      %1688 = vmatprep.subr.mxu0 0.0
      %1689 = vmatpush1.msra.mxu0 0.0
      %1690 = vmatprep.subr.mxu0 0.0
      %1691 = vmatpush1.msra.mxu0 0.0
      %1692 = vmatprep.subr.mxu0 0.0
      %1693 = vmatpush1.msra.mxu0 0.0
      %1694 = vmatprep.subr.mxu0 0.0
      %1695 = vmatpush1.msra.mxu0 0.0
      %1696 = vmatprep.subr.mxu0 0.0
      %1697 = vmatpush1.msra.mxu0 0.0
      %1698 = vmatprep.subr.mxu0 0.0
      %1699 = vmatpush1.msra.mxu0 0.0
      %1700 = vmatprep.subr.mxu0 0.0
      %1701 = vmatpush1.msra.mxu0 0.0
      %1702 = vmatprep.subr.mxu0 0.0
      %1703 = vmatpush1.msra.mxu0 0.0
      %1704 = vmatprep.subr.mxu0 0.0
      %1705 = vmatpush1.msra.mxu0 0.0
      %1706 = vmatprep.subr.mxu0 0.0
      %1707 = vmatpush1.msra.mxu0 0.0
      %1708 = vmatprep.subr.mxu0 0.0
      %1709 = vmatpush1.msra.mxu0 0.0
      %1710 = vmatprep.subr.mxu0 0.0
      %1711 = vmatpush1.msra.mxu0 0.0
      %1712 = vmatprep.mubr.f32.mxu0 0.0
      %1713 = vmatmul.mubr.f32.gmra.mrb[0].mxu0 %v1643
      %v1714 = vpop.f32.mrb[0].mxu0
      %v1715 = vadd.f32 %v1641, %v1714
      %v1716 = vpop.f32.mrb[0].mxu0
      %1717 = vmatprep.mubr.f32.mxu0 0.0
      %1718 = vmatmul.mubr.f32.gmra.mrb[0].mxu0 %v1646
      %v1719 = vpop.f32.mrb[0].mxu0
      %v1720 = vadd.f32 %v1641, %v1719
      %v1721 = vpop.f32.mrb[0].mxu0
      %1722 = vdwg.mxu0
      %v1723 = vmax.f32 %v1715, 0.0
      %v1724 = vmax.f32 %v1720, 0.0
      %v1725 = vld [vmem:[%s3] sm:$0xff]
      %v1726 = vld [vmem:[%s3 + $0x8] sm:$0xff]
      %v1727 = vld [vmem:[%s3 + $0x10] sm:$0xff]
      %v1728 = vld [vmem:[%s3 + $0x18] sm:$0xff]
      %v1729 = vld [vmem:[%s3 + $0x20] sm:$0xff]
      %v1730 = vld [vmem:[%s3 + $0x28] sm:$0xff]
      %v1731 = vld [vmem:[%s3 + $0x30] sm:$0xff]
      %v1732 = vld [vmem:[%s3 + $0x38] sm:$0xff]
      %v1733 = vlaneseq
      %v1734 = vshrl.u32 %v1733, 7
      %v1735 = vsub.s32 3, %v1734
      %v1736 = vrot.slane %v250, %v1735
      %vm1737 = vcmask 523264
      %v1739 = vsel %vm1737, %v1723, 0
      %v1742 = vsel %vm1737, %v1724, 0
      %1744 = vmatprep.subr.mxu0 0.0
      %1745 = vmatpush1.msra.mxu0 %v1725
      %1746 = vmatprep.subr.mxu0 0.0
      %1747 = vmatpush1.msra.mxu0 %v1726
      %1748 = vmatprep.subr.mxu0 0.0
      %1749 = vmatpush1.msra.mxu0 %v1727
      %1750 = vmatprep.subr.mxu0 0.0
      %1751 = vmatpush1.msra.mxu0 %v1728
      %1752 = vmatprep.subr.mxu0 0.0
      %1753 = vmatpush1.msra.mxu0 %v1729
      %1754 = vmatprep.subr.mxu0 0.0
      %1755 = vmatpush1.msra.mxu0 %v1730
      %1756 = vmatprep.subr.mxu0 0.0
      %1757 = vmatpush1.msra.mxu0 %v1731
      %1758 = vmatprep.subr.mxu0 0.0
      %1759 = vmatpush1.msra.mxu0 %v1732
      %1760 = vmatprep.subr.mxu0 0.0
      %1761 = vmatpush1.msra.mxu0 0.0
      %1762 = vmatprep.subr.mxu0 0.0
      %1763 = vmatpush1.msra.mxu0 0.0
      %1764 = vmatprep.subr.mxu0 0.0
      %1765 = vmatpush1.msra.mxu0 0.0
      %1766 = vmatprep.subr.mxu0 0.0
      %1767 = vmatpush1.msra.mxu0 0.0
      %1768 = vmatprep.subr.mxu0 0.0
      %1769 = vmatpush1.msra.mxu0 0.0
      %1770 = vmatprep.subr.mxu0 0.0
      %1771 = vmatpush1.msra.mxu0 0.0
      %1772 = vmatprep.subr.mxu0 0.0
      %1773 = vmatpush1.msra.mxu0 0.0
      %1774 = vmatprep.subr.mxu0 0.0
      %1775 = vmatpush1.msra.mxu0 0.0
      %1776 = vmatprep.subr.mxu0 0.0
      %1777 = vmatpush1.msra.mxu0 0.0
      %1778 = vmatprep.subr.mxu0 0.0
      %1779 = vmatpush1.msra.mxu0 0.0
      %1780 = vmatprep.subr.mxu0 0.0
      %1781 = vmatpush1.msra.mxu0 0.0
      %1782 = vmatprep.subr.mxu0 0.0
      %1783 = vmatpush1.msra.mxu0 0.0
      %1784 = vmatprep.subr.mxu0 0.0
      %1785 = vmatpush1.msra.mxu0 0.0
      %1786 = vmatprep.subr.mxu0 0.0
      %1787 = vmatpush1.msra.mxu0 0.0
      %1788 = vmatprep.subr.mxu0 0.0
      %1789 = vmatpush1.msra.mxu0 0.0
      %1790 = vmatprep.subr.mxu0 0.0
      %1791 = vmatpush1.msra.mxu0 0.0
      %1792 = vmatprep.subr.mxu0 0.0
      %1793 = vmatpush1.msra.mxu0 0.0
      %1794 = vmatprep.subr.mxu0 0.0
      %1795 = vmatpush1.msra.mxu0 0.0
      %1796 = vmatprep.subr.mxu0 0.0
      %1797 = vmatpush1.msra.mxu0 0.0
      %1798 = vmatprep.subr.mxu0 0.0
      %1799 = vmatpush1.msra.mxu0 0.0
      %1800 = vmatprep.subr.mxu0 0.0
      %1801 = vmatpush1.msra.mxu0 0.0
      %1802 = vmatprep.subr.mxu0 0.0
      %1803 = vmatpush1.msra.mxu0 0.0
      %1804 = vmatprep.subr.mxu0 0.0
      %1805 = vmatpush1.msra.mxu0 0.0
      %1806 = vmatprep.subr.mxu0 0.0
      %1807 = vmatpush1.msra.mxu0 0.0
      %1808 = vmatprep.mubr.f32.mxu0 0.0
      %1809 = vmatmul.mubr.f32.gmra.mrb[0].mxu0 %v1739
      %v1810 = vpop.f32.mrb[0].mxu0
      %v1811 = vadd.f32 %v1736, %v1810
      %v1812 = vpop.f32.mrb[0].mxu0
      %1813 = vmatprep.mubr.f32.mxu0 0.0
      %1814 = vmatmul.mubr.f32.gmra.mrb[0].mxu0 %v1742
      %v1815 = vpop.f32.mrb[0].mxu0
      %v1816 = vadd.f32 %v1736, %v1815
      %v1817 = vpop.f32.mrb[0].mxu0
      %1818 = vdwg.mxu0
      %v1819 = vadd.f32 %v1632, %v1811
      %v1820 = vadd.f32 %v1633, %v1816
      %v1821 = vsel %vm259, %v1819, 0.0
      %1822 = vadd.xlane.f32.xlu0 %v1821
      %v1823 = vpop.xlane.xlu0 %1822
      %v1824 = vsel %vm1597, %v1820, 0.0
      %1825 = vadd.xlane.f32.xlu0 %v1824
      %v1826 = vpop.xlane.xlu0 %1825
      %v1827 = vmul.f32 %v1823, %v1601
      %v1828 = vmul.f32 %v1826, %v1601
      %v1829 = vsub.f32 %v1819, %v1827
      %v1830 = vsub.f32 %v1820, %v1828
      %v1831 = vmul.f32 %v1829, %v1829
      %v1832 = vmul.f32 %v1830, %v1830
      %v1833 = vsel %vm259, %v1831, 0.0
      %1834 = vadd.xlane.f32.xlu0 %v1833
      %v1835 = vpop.xlane.xlu0 %1834
      %v1836 = vsel %vm1597, %v1832, 0.0
      %1837 = vadd.xlane.f32.xlu0 %v1836
      %v1838 = vpop.xlane.xlu0 %1837
      %v1839 = vmul.f32 %v1835, %v1601
      %v1840 = vmul.f32 %v1838, %v1601
      %v1841 = vadd.f32 %v1839, 1e-05
      %v1842 = vadd.f32 %v1840, 1e-05
      %v1843 = vrsqrt.pop %v1841
      %v1844 = vrsqrt.pop %v1842
      %v1845 = vmul.f32 %v1829, %v1843
      %v1846 = vmul.f32 %v1830, %v1844
      %v1847 = vlaneseq
      %v1848 = vshrl.u32 %v1847, 7
      %v1849 = vsub.s32 6, %v1848
      %v1850 = vrot.slane %v250, %v1849
      %v1851 = vmul.f32 %v1845, %v1850
      %v1852 = vmul.f32 %v1846, %v1850
      %v1853 = vlaneseq
      %v1854 = vshrl.u32 %v1853, 7
      %v1855 = vsub.s32 7, %v1854
      %v1856 = vrot.slane %v250, %v1855
      %v1857 = vadd.f32 %v1851, %v1856
      %v1858 = vadd.f32 %v1852, %v1856
      %1859 = vst.msk [vmem:[%s244] sm:$0xff] %vm259, %v245
      %1860 = vst.msk [vmem:[%s244 + $0x8] sm:$0xff] %vm259, %v1857
      %1861 = vst.msk [vmem:[%s244 + $0x10] sm:$0x3] %vm1597, %v1858
      %p1862 = scmp.lt.s32.totalorder %s16, 3
      %s1863 = scalar_select %p1862, %s16, 3
      %s1864 = smul.addr %s1863, 3
      %s1865 = smul.addr %s1864, 8
      %s1866 = scalar_lea.vmem %s5, %s1865
      // Predicated region
      $region41: #{tpu_custom_call.1} parent=39 // pred_check
        %p1867 = pneg %p149
      $region42: #{tpu_custom_call.1} parent=39 // pred_check_branch
        %1869 = sbr.rel (%p1867) target = $region44
      $region43: #{tpu_custom_call.1} parent=39 // pred_region
        _
      $region44: #{tpu_custom_call.1} parent=39 // pred_fallthru
        _
    $region40: #{tpu_custom_call.1} parent=5 // pred_fallthru
      _
    %p1870 = scmp.le.s32.totalorder 2, %s11
    // Predicated region
    $region45: #{tpu_custom_call.1} parent=5 // pred_check
      %p1871 = pneg %p1870
    $region46: #{tpu_custom_call.1} parent=5 // pred_check_branch
      %1873 = sbr.rel (%p1871) target = $region48
    $region47: #{tpu_custom_call.1} parent=5 // pred_region
      %s1874 = ssub.s32 %s11, 2
      // Predicated region
      $region49: #{tpu_custom_call.1} parent=47 // pred_check
        %p1875 = pneg %p155
      $region50: #{tpu_custom_call.1} parent=47 // pred_check_branch
        %1877 = sbr.rel (%p1875) target = $region52
      $region51: #{tpu_custom_call.1} parent=47 // pred_region
        %p1878 = scmp.lt.s32.totalorder %s17, 3
        %s1879 = scalar_select %p1878, %s17, 3
        %s1880 = smul.addr %s1879, 3
        %s1881 = smul.addr %s1880, 8
        %s1882 = scalar_lea.vmem %s5, %s1881
      $region52: #{tpu_custom_call.1} parent=47 // pred_fallthru
        _
    $region48: #{tpu_custom_call.1} parent=5 // pred_fallthru
      _
  $region6: #{tpu_custom_call.1} parent=0 // loop_footer
    %s15 = sadd.s32 1, %s11
  $region7: #{tpu_custom_call.1} parent=0 // loop_footer_branch
    %10 = sbr.rel target = $region3
  $region8: #{tpu_custom_call.1} parent=0 // loop_exit
    _

</llo_original>
